<compile_context>
chip_gen: v7x
topology: tpu7x:2x2x1
jax: 0.10.0
libtpu: 0.0.40
codegen_flags: <defaults>
</compile_context>

<pallas_src>
import jax
import jax.numpy as jnp
from jax.experimental import pallas as pl
from jax.experimental.pallas import tpu as pltpu
import numpy as np


def dgm_layer_kernel(xt_ref, st_ref, wxt_ref, wst_ref, whst_ref, bt_ref, out_ref):
    # Feature-major layout: batch lives on the lane axis, so every vreg,
    # matmul-N and the output store is lane-dense even with dim_x=16 / dim_S=32.
    xt = xt_ref[...]                       # (dim_x, TB)
    st = st_ref[...]                       # (dim_S, TB)
    dS = st.shape[0]

    # Fused pre-activation for all four gates (one accumulation, one bias add):
    #   a = Wx_all^T @ x^T + Ws_pad^T @ S^T + b^T        -> (4*dS, TB)
    # Ws_pad has zero rows for the H gate (its S-side uses S*R, added below).
    a = (
        jnp.dot(wxt_ref[...], xt, preferred_element_type=jnp.float32)
        + jnp.dot(wst_ref[...], st, preferred_element_type=jnp.float32)
        + bt_ref[...]
    )

    zgr = jnp.tanh(a[: 3 * dS, :])         # activation='Tanh' (module default)
    Z = zgr[0 * dS:1 * dS, :]
    G = zgr[1 * dS:2 * dS, :]
    R = zgr[2 * dS:3 * dS, :]

    # input_gate_H = cat([x, S*R], 1): x-part + bias already sit in a[3*dS:].
    H = jnp.tanh(
        a[3 * dS:, :]
        + jnp.dot(whst_ref[...], st * R, preferred_element_type=jnp.float32)
    )

    # (dim_S, TB) with TB a multiple of 128 -> unmasked, lane-dense writeback.
    out_ref[...] = (1.0 - G) * H + Z * st


def _pick_tile_cols(B, block_cols):
    """Lane (batch-tile) width: big tiles; aim for >=2 grid steps (v7x megacore)."""
    if block_cols is None:
        block_cols = min(8192, max(128, -(-B // 2)))   # ~B/2, capped at 8192
    tb = min(block_cols, B)
    if tb < B:
        # A tiled last dim must be a multiple of 128 lanes.
        tb = max(128, (tb // 128) * 128)
    return tb


def dgm_layer_pallas(x, S, params, *, block_cols=None):
    B, dim_x = x.shape
    dim_S = S.shape[1]
    f32 = jnp.float32

    # ---- host-side packing (gate order Z, G, R, H), feature-major / transposed ----
    wx_t = jnp.concatenate(
        [params["wzx"], params["wgx"], params["wrx"], params["whx"]], axis=1
    ).T.astype(f32)                                          # (4*dS, dim_x)
    ws_t = jnp.concatenate(
        [params["wzs"], params["wgs"], params["wrs"],
         jnp.zeros((dim_S, dim_S), f32)], axis=1             # zero rows for H gate
    ).T.astype(f32)                                          # (4*dS, dim_S)
    whs_t = params["whs"].T.astype(f32)                      # (dim_S, dim_S)
    b_t = jnp.concatenate(
        [params["bz"], params["bg"], params["br"], params["bh"]], axis=1
    ).T.astype(f32)                                          # (4*dS, 1)

    x_t = x.T.astype(f32)                                    # (dim_x, B)
    s_t = S.T.astype(f32)                                    # (dim_S, B)

    tb = _pick_tile_cols(B, block_cols)
    grid = (pl.cdiv(B, tb),)

    grid_spec = pltpu.PrefetchScalarGridSpec(
        num_scalar_prefetch=0,
        grid=grid,
        in_specs=[
            # Streamed (pipelined) activations, batch on lanes.
            pl.BlockSpec((dim_x, tb), lambda i: (0, i)),
            pl.BlockSpec((dim_S, tb), lambda i: (0, i)),
            # Tiny fused weights / bias: constant index_map -> VMEM-resident.
            pl.BlockSpec((4 * dim_S, dim_x), lambda i: (0, 0)),
            pl.BlockSpec((4 * dim_S, dim_S), lambda i: (0, 0)),
            pl.BlockSpec((dim_S, dim_S), lambda i: (0, 0)),
            pl.BlockSpec((4 * dim_S, 1), lambda i: (0, 0)),
        ],
        out_specs=pl.BlockSpec((dim_S, tb), lambda i: (0, i)),
    )

    out_t = pl.pallas_call(
        dgm_layer_kernel,
        out_shape=jax.ShapeDtypeStruct((dim_S, B), f32),
        grid_spec=grid_spec,
        compiler_params=pltpu.CompilerParams(
            # Independent batch tiles: shard the grid over v7x's 2 TensorCores.
            dimension_semantics=("parallel",),
            # Lane-dense tiles are a few MB even at tb=8192; 32 MiB fits every gen.
            vmem_limit_bytes=32 * 1024 * 1024,
        ),
    )(x_t, s_t, wx_t, ws_t, whs_t, b_t)

    return out_t.T                                           # (B, dim_S)


def dgm_layer_reference(x, S, params):
    """Pure-JAX reference built from the UNFUSED per-gate params."""
    def gate(wx, ws, b, rhs_s):
        return jnp.tanh(x @ wx + rhs_s @ ws + b)

    Z = gate(params["wzx"], params["wzs"], params["bz"], S)
    G = gate(params["wgx"], params["wgs"], params["bg"], S)
    R = gate(params["wrx"], params["wrs"], params["br"], S)
    H = gate(params["whx"], params["whs"], params["bh"], S * R)
    return (1.0 - G) * H + Z * S


def init_params(key, dim_x, dim_S):
    """Deterministic init mimicking nn.Linear's U(-1/sqrt(fan_in), 1/sqrt(fan_in))."""
    fan_in = dim_x + dim_S
    bound = 1.0 / np.sqrt(fan_in)
    params = {}
    keys = jax.random.split(key, 8)
    for i, g in enumerate(["z", "g", "r", "h"]):
        w = jax.random.uniform(
            keys[2 * i], (fan_in, dim_S), jnp.float32, -bound, bound
        )
        b = jax.random.uniform(
            keys[2 * i + 1], (1, dim_S), jnp.float32, -bound, bound
        )
        params[f"w{g}x"] = w[:dim_x, :]
        params[f"w{g}s"] = w[dim_x:, :]
        params[f"b{g}"] = b
    return params


if __name__ == "__main__":
    key = jax.random.PRNGKey(0)

    def run_case(B, dim_x, dim_S, block_cols=None):
        kx, ks, kp = jax.random.split(jax.random.fold_in(key, B), 3)
        x = jax.random.normal(kx, (B, dim_x), jnp.float32)
        S = jax.random.normal(ks, (B, dim_S), jnp.float32)
        params = init_params(kp, dim_x, dim_S)
        out = jax.block_until_ready(
            dgm_layer_pallas(x, S, params, block_cols=block_cols)
        )
        ref = dgm_layer_reference(x, S, params)
        np.testing.assert_allclose(np.asarray(out), np.asarray(ref),
                                   rtol=1e-5, atol=1e-5)

    # Main case: B=1024 -> two 512-lane tiles (grid=(2,), keeps both v7x TCs busy).
    run_case(1024, 16, 32)
    # Non-divisible batch: exercises the masked partial last tile.
    run_case(1000, 16, 32)

    print("KERNEL_OK")
</pallas_src>

<mosaic_0001>
module attributes {stable_mosaic.version = 11 : i64} {
  func.func @dgm_layer_kernel(%arg0: i32, %arg1: memref<16x512xf32, #tpu.memory_space<vmem>>, %arg2: memref<32x512xf32, #tpu.memory_space<vmem>>, %arg3: memref<128x16xf32, #tpu.memory_space<vmem>>, %arg4: memref<128x32xf32, #tpu.memory_space<vmem>>, %arg5: memref<32x32xf32, #tpu.memory_space<vmem>>, %arg6: memref<128x1xf32, #tpu.memory_space<vmem>>, %arg7: memref<32x512xf32, #tpu.memory_space<vmem>>) attributes {dimension_semantics = [#tpu.dimension_semantics<parallel>], iteration_bounds = array<i64: 2>, scalar_prefetch = 0 : i64, scratch_operands = 0 : i64, tpu.core_type = #tpu.core_type<tc>, window_params = [{transform_indices = @transform_0, window_bounds = array<i64: 16, 512>}, {transform_indices = @transform_1, window_bounds = array<i64: 32, 512>}, {pipeline_mode = #tpu.pipeline_mode<synchronous>, transform_indices = @transform_2, window_bounds = array<i64: 128, 16>}, {pipeline_mode = #tpu.pipeline_mode<synchronous>, transform_indices = @transform_3, window_bounds = array<i64: 128, 32>}, {pipeline_mode = #tpu.pipeline_mode<synchronous>, transform_indices = @transform_4, window_bounds = array<i64: 32, 32>}, {pipeline_mode = #tpu.pipeline_mode<synchronous>, transform_indices = @transform_5, window_bounds = array<i64: 128, 1>}, {transform_indices = @transform_6, window_bounds = array<i64: 32, 512>}]} {
    %c0 = arith.constant 0 : index
    %c0_0 = arith.constant 0 : index
    %0 = vector.load %arg1[%c0, %c0_0] : memref<16x512xf32, #tpu.memory_space<vmem>>, vector<16x512xf32>
    %c0_1 = arith.constant 0 : index
    %c0_2 = arith.constant 0 : index
    %1 = vector.load %arg2[%c0_1, %c0_2] : memref<32x512xf32, #tpu.memory_space<vmem>>, vector<32x512xf32>
    %c0_3 = arith.constant 0 : index
    %c0_4 = arith.constant 0 : index
    %2 = vector.load %arg3[%c0_3, %c0_4] : memref<128x16xf32, #tpu.memory_space<vmem>>, vector<128x16xf32>
    %cst = arith.constant dense<0.000000e+00> : vector<128x512xf32>
    %3 = tpu.matmul %2, %0, %cst {dimension_numbers = #tpu.dot_dimension_numbers<[1], [0], [0], [1], [0, 0, 1, 1], [], []>} : vector<128x16xf32>, vector<16x512xf32>, vector<128x512xf32> -> vector<128x512xf32>
    %c0_5 = arith.constant 0 : index
    %c0_6 = arith.constant 0 : index
    %4 = vector.load %arg4[%c0_5, %c0_6] : memref<128x32xf32, #tpu.memory_space<vmem>>, vector<128x32xf32>
    %cst_7 = arith.constant dense<0.000000e+00> : vector<128x512xf32>
    %5 = tpu.matmul %4, %1, %cst_7 {dimension_numbers = #tpu.dot_dimension_numbers<[1], [0], [0], [1], [0, 0, 1, 1], [], []>} : vector<128x32xf32>, vector<32x512xf32>, vector<128x512xf32> -> vector<128x512xf32>
    %6 = arith.addf %3, %5 : vector<128x512xf32>
    %c0_8 = arith.constant 0 : index
    %c0_9 = arith.constant 0 : index
    %7 = vector.load %arg6[%c0_8, %c0_9] : memref<128x1xf32, #tpu.memory_space<vmem>>, vector<128x1xf32>
    %8 = vector.broadcast %7 : vector<128x1xf32> to vector<128x512xf32>
    %9 = arith.addf %6, %8 : vector<128x512xf32>
    %10 = vector.extract_strided_slice %9 {offsets = [0, 0], sizes = [96, 512], strides = [1, 1]} : vector<128x512xf32> to vector<96x512xf32>
    %11 = math.tanh %10 : vector<96x512xf32>
    %12 = vector.extract_strided_slice %11 {offsets = [0, 0], sizes = [32, 512], strides = [1, 1]} : vector<96x512xf32> to vector<32x512xf32>
    %13 = vector.extract_strided_slice %11 {offsets = [32, 0], sizes = [32, 512], strides = [1, 1]} : vector<96x512xf32> to vector<32x512xf32>
    %14 = vector.extract_strided_slice %11 {offsets = [64, 0], sizes = [32, 512], strides = [1, 1]} : vector<96x512xf32> to vector<32x512xf32>
    %15 = vector.extract_strided_slice %9 {offsets = [96, 0], sizes = [32, 512], strides = [1, 1]} : vector<128x512xf32> to vector<32x512xf32>
    %c0_10 = arith.constant 0 : index
    %c0_11 = arith.constant 0 : index
    %16 = vector.load %arg5[%c0_10, %c0_11] : memref<32x32xf32, #tpu.memory_space<vmem>>, vector<32x32xf32>
    %17 = arith.mulf %1, %14 : vector<32x512xf32>
    %cst_12 = arith.constant dense<0.000000e+00> : vector<32x512xf32>
    %18 = tpu.matmul %16, %17, %cst_12 {dimension_numbers = #tpu.dot_dimension_numbers<[1], [0], [0], [1], [0, 0, 1, 1], [], []>} : vector<32x32xf32>, vector<32x512xf32>, vector<32x512xf32> -> vector<32x512xf32>
    %19 = arith.addf %15, %18 : vector<32x512xf32>
    %20 = math.tanh %19 : vector<32x512xf32>
    %cst_13 = arith.constant 1.000000e+00 : f32
    %21 = vector.broadcast %cst_13 : f32 to vector<32x512xf32>
    %22 = arith.subf %21, %13 : vector<32x512xf32>
    %23 = arith.mulf %22, %20 : vector<32x512xf32>
    %24 = arith.mulf %12, %1 : vector<32x512xf32>
    %25 = arith.addf %23, %24 : vector<32x512xf32>
    %c0_14 = arith.constant 0 : index
    %c0_15 = arith.constant 0 : index
    %26 = vector.load %arg7[%c0_14, %c0_15] : memref<32x512xf32, #tpu.memory_space<vmem>>, vector<32x512xf32>
    tpu.vector_store %arg7[%c0_14, %c0_15], %25 {strides = array<i32>} : memref<32x512xf32, #tpu.memory_space<vmem>>, vector<32x512xf32>,
    return
  }
  func.func @transform_0(%arg0: i32) -> (i32, i32) {
    %c0_i32 = arith.constant 0 : i32
    %c0_i32_0 = arith.constant 0 : i32
    return %c0_i32, %arg0 : i32, i32
  }
  func.func @transform_1(%arg0: i32) -> (i32, i32) {
    %c0_i32 = arith.constant 0 : i32
    %c0_i32_0 = arith.constant 0 : i32
    return %c0_i32, %arg0 : i32, i32
  }
  func.func @transform_2(%arg0: i32) -> (i32, i32) {
    %c0_i32 = arith.constant 0 : i32
    %c0_i32_0 = arith.constant 0 : i32
    %c0_i32_1 = arith.constant 0 : i32
    return %c0_i32, %c0_i32_0 : i32, i32
  }
  func.func @transform_3(%arg0: i32) -> (i32, i32) {
    %c0_i32 = arith.constant 0 : i32
    %c0_i32_0 = arith.constant 0 : i32
    %c0_i32_1 = arith.constant 0 : i32
    return %c0_i32, %c0_i32_0 : i32, i32
  }
  func.func @transform_4(%arg0: i32) -> (i32, i32) {
    %c0_i32 = arith.constant 0 : i32
    %c0_i32_0 = arith.constant 0 : i32
    %c0_i32_1 = arith.constant 0 : i32
    return %c0_i32, %c0_i32_0 : i32, i32
  }
  func.func @transform_5(%arg0: i32) -> (i32, i32) {
    %c0_i32 = arith.constant 0 : i32
    %c0_i32_0 = arith.constant 0 : i32
    %c0_i32_1 = arith.constant 0 : i32
    return %c0_i32, %c0_i32_0 : i32, i32
  }
  func.func @transform_6(%arg0: i32) -> (i32, i32) {
    %c0_i32 = arith.constant 0 : i32
    %c0_i32_0 = arith.constant 0 : i32
    return %c0_i32, %arg0 : i32, i32
  }
}

</mosaic_0001>

<llo_original>
// kernel: tpu_custom_call.1
$region0: #{tpu_custom_call.1}
  #allocation0 [shape = 'u32[]', space=smem, size = 0x4, offset = 0x4, fixed_abs, tag = 'smem constant byte address 0x4 - core index']
  #allocation1 [shape = 'u32[144,128]{1,0:T(1,128)}', space=vmem, size = 0x12000, scoped, tag = 'internal scratch']
  %s0 = inlined_call_operand.vmem [shape: f32[16,1024], index: 0, kind: input, shape index: {}]
  %s1 = inlined_call_operand.vmem [shape: f32[32,1024], index: 1, kind: input, shape index: {}]
  %s2 = inlined_call_operand.vmem [shape: f32[128,16], index: 2, kind: input, shape index: {}]
  %s3 = inlined_call_operand.vmem [shape: f32[128,32], index: 3, kind: input, shape index: {}]
  %s4 = inlined_call_operand.vmem [shape: f32[32,32], index: 4, kind: input, shape index: {}]
  %s5 = inlined_call_operand.vmem [shape: f32[128,1], index: 5, kind: input, shape index: {}]
  %s6 = inlined_call_operand.hbm [shape: f32[32,1024], index: 6, kind: output, shape index: {}]
  %s7 = sld [smem:[#allocation0]]
  $region103: #{tpu_custom_call.1} parent=0
    _
  %s9 = ssub.s32 1, %s7
  %s10 = scalar_select 0, %s9, %s7
  $region1: #{tpu_custom_call.1} parent=0
    #allocation2 [shape = 'u8[65536]{0}', space=vmem, size = 0x10000, scoped, tag = 'input window, operand 0']
    #allocation3 [shape = 'u8[131072]{0}', space=vmem, size = 0x20000, scoped, tag = 'input window, operand 1']
    #allocation4 [shape = 'u8[131072]{0}', space=vmem, size = 0x20000, scoped, tag = 'output window, operand 0']
    #allocation5 [shape = 's32[2]{0}', space=sflag, size = 0x8, scoped, tag = 'scoped memory for tpu_custom_call.1']
    %11 = vsyncpa [#allocation5], 0
    %s12 = scalar_lea.sflag [#allocation5], 1
    %13 = vsyncpa %s12, 0
    loop: start=0, step=1, limit=4
    $region2: #{tpu_custom_call.1} parent=1 // loop_pre_header
      _
    $region3: #{tpu_custom_call.1} parent=1 // loop_header
      %s15 = sphi 0, %s19
      %p16 = scmp.ge.s32.totalorder %s15, 4
      %s25 = sphi 0, %s27
      %s28 = sphi 0, %s25
      %s29 = sphi 0, %s28
      %s45 = sphi 0, %s29
      %s51 = sphi 0, %s53
      %s54 = sphi 0, %s51
      %s55 = sphi 0, %s54
      %s71 = sphi 0, %s55
      %s75 = sphi 0, %s75
      %s77 = sphi 0, %s75
      %s78 = sphi 0, %s77
      %s92 = sphi 0, %s78
      %s96 = sphi 0, %s96
      %s98 = sphi 0, %s96
      %s99 = sphi 0, %s98
      %s113 = sphi 0, %s99
      %s117 = sphi 0, %s117
      %s119 = sphi 0, %s117
      %s120 = sphi 0, %s119
      %s134 = sphi 0, %s120
      %s138 = sphi 0, %s138
      %s140 = sphi 0, %s138
      %s141 = sphi 0, %s140
      %s155 = sphi 0, %s141
      %s161 = sphi 0, %s163
      %s164 = sphi 0, %s161
      %s165 = sphi 0, %s164
      %s181 = sphi 0, %s165
    $region4: #{tpu_custom_call.1} parent=1 // loop_header_branch
      %18 = sbr.rel (%p16) target = $region8
    $region5: #{tpu_custom_call.1} parent=1 // loop_body
      %s20 = ssub.s32 %s15, 1
      %s21 = ssub.s32 %s15, 2
      %s22 = sadd.s32 %s15, 1
      %s23 = ssub.s32 %s15, %s22
      %p24 = scmp.eq.s32.totalorder %s23, 0
      %s26 = sadd.s32 %s25, 1
      %s27 = scalar_select %p24, %s25, %s26
      %p30 = pneg %p24
      %p31 = scmp.eq.s32.totalorder %s15, 1
      %p32 = por %p30, %p31
      %p33 = scmp.ne.s32.totalorder %s25, %s28
      %p34 = scmp.eq.s32.totalorder %s15, 0
      %p35 = por %p33, %p34
      %p36 = scmp.ne.s32.totalorder %s25, %s28
      %p37 = scmp.eq.s32.totalorder %s20, 1
      %p38 = por %p36, %p37
      %p39 = scmp.ne.s32.totalorder %s28, %s29
      %p40 = scmp.eq.s32.totalorder %s20, 0
      %p41 = por %p39, %p40
      %p42 = scmp.ne.s32.totalorder %s28, %s29
      %p43 = scmp.eq.s32.totalorder %s21, 1
      %p44 = por %p42, %p43
      %p46 = scmp.ne.s32.totalorder %s29, %s45
      %p47 = scmp.eq.s32.totalorder %s21, 0
      %p48 = por %p46, %p47
      %s49 = ssub.s32 %s15, %s22
      %p50 = scmp.eq.s32.totalorder %s49, 0
      %s52 = sadd.s32 %s51, 1
      %s53 = scalar_select %p50, %s51, %s52
      %p56 = pneg %p50
      %p57 = scmp.eq.s32.totalorder %s15, 1
      %p58 = por %p56, %p57
      %p59 = scmp.ne.s32.totalorder %s51, %s54
      %p60 = scmp.eq.s32.totalorder %s15, 0
      %p61 = por %p59, %p60
      %p62 = scmp.ne.s32.totalorder %s51, %s54
      %p63 = scmp.eq.s32.totalorder %s20, 1
      %p64 = por %p62, %p63
      %p65 = scmp.ne.s32.totalorder %s54, %s55
      %p66 = scmp.eq.s32.totalorder %s20, 0
      %p67 = por %p65, %p66
      %p68 = scmp.ne.s32.totalorder %s54, %s55
      %p69 = scmp.eq.s32.totalorder %s21, 1
      %p70 = por %p68, %p69
      %p72 = scmp.ne.s32.totalorder %s55, %s71
      %p73 = scmp.eq.s32.totalorder %s21, 0
      %p74 = por %p72, %p73
      %s76 = sadd.s32 %s75, 1
      %p79 = scmp.eq.s32.totalorder %s15, 1
      %p80 = scmp.ne.s32.totalorder %s75, %s77
      %p81 = scmp.eq.s32.totalorder %s15, 0
      %p82 = por %p80, %p81
      %p83 = scmp.ne.s32.totalorder %s75, %s77
      %p84 = scmp.eq.s32.totalorder %s20, 1
      %p85 = por %p83, %p84
      %p86 = scmp.ne.s32.totalorder %s77, %s78
      %p87 = scmp.eq.s32.totalorder %s20, 0
      %p88 = por %p86, %p87
      %p89 = scmp.ne.s32.totalorder %s77, %s78
      %p90 = scmp.eq.s32.totalorder %s21, 1
      %p91 = por %p89, %p90
      %p93 = scmp.ne.s32.totalorder %s78, %s92
      %p94 = scmp.eq.s32.totalorder %s21, 0
      %p95 = por %p93, %p94
      %s97 = sadd.s32 %s96, 1
      %p100 = scmp.eq.s32.totalorder %s15, 1
      %p101 = scmp.ne.s32.totalorder %s96, %s98
      %p102 = scmp.eq.s32.totalorder %s15, 0
      %p103 = por %p101, %p102
      %p104 = scmp.ne.s32.totalorder %s96, %s98
      %p105 = scmp.eq.s32.totalorder %s20, 1
      %p106 = por %p104, %p105
      %p107 = scmp.ne.s32.totalorder %s98, %s99
      %p108 = scmp.eq.s32.totalorder %s20, 0
      %p109 = por %p107, %p108
      %p110 = scmp.ne.s32.totalorder %s98, %s99
      %p111 = scmp.eq.s32.totalorder %s21, 1
      %p112 = por %p110, %p111
      %p114 = scmp.ne.s32.totalorder %s99, %s113
      %p115 = scmp.eq.s32.totalorder %s21, 0
      %p116 = por %p114, %p115
      %s118 = sadd.s32 %s117, 1
      %p121 = scmp.eq.s32.totalorder %s15, 1
      %p122 = scmp.ne.s32.totalorder %s117, %s119
      %p123 = scmp.eq.s32.totalorder %s15, 0
      %p124 = por %p122, %p123
      %p125 = scmp.ne.s32.totalorder %s117, %s119
      %p126 = scmp.eq.s32.totalorder %s20, 1
      %p127 = por %p125, %p126
      %p128 = scmp.ne.s32.totalorder %s119, %s120
      %p129 = scmp.eq.s32.totalorder %s20, 0
      %p130 = por %p128, %p129
      %p131 = scmp.ne.s32.totalorder %s119, %s120
      %p132 = scmp.eq.s32.totalorder %s21, 1
      %p133 = por %p131, %p132
      %p135 = scmp.ne.s32.totalorder %s120, %s134
      %p136 = scmp.eq.s32.totalorder %s21, 0
      %p137 = por %p135, %p136
      %s139 = sadd.s32 %s138, 1
      %p142 = scmp.eq.s32.totalorder %s15, 1
      %p143 = scmp.ne.s32.totalorder %s138, %s140
      %p144 = scmp.eq.s32.totalorder %s15, 0
      %p145 = por %p143, %p144
      %p146 = scmp.ne.s32.totalorder %s138, %s140
      %p147 = scmp.eq.s32.totalorder %s20, 1
      %p148 = por %p146, %p147
      %p149 = scmp.ne.s32.totalorder %s140, %s141
      %p150 = scmp.eq.s32.totalorder %s20, 0
      %p151 = por %p149, %p150
      %p152 = scmp.ne.s32.totalorder %s140, %s141
      %p153 = scmp.eq.s32.totalorder %s21, 1
      %p154 = por %p152, %p153
      %p156 = scmp.ne.s32.totalorder %s141, %s155
      %p157 = scmp.eq.s32.totalorder %s21, 0
      %p158 = por %p156, %p157
      %s159 = ssub.s32 %s15, %s22
      %p160 = scmp.eq.s32.totalorder %s159, 0
      %s162 = sadd.s32 %s161, 1
      %s163 = scalar_select %p160, %s161, %s162
      %p166 = pneg %p160
      %p167 = scmp.eq.s32.totalorder %s15, 1
      %p168 = por %p166, %p167
      %p169 = scmp.ne.s32.totalorder %s161, %s164
      %p170 = scmp.eq.s32.totalorder %s15, 0
      %p171 = por %p169, %p170
      %p172 = scmp.ne.s32.totalorder %s161, %s164
      %p173 = scmp.eq.s32.totalorder %s20, 1
      %p174 = por %p172, %p173
      %p175 = scmp.ne.s32.totalorder %s164, %s165
      %p176 = scmp.eq.s32.totalorder %s20, 0
      %p177 = por %p175, %p176
      %p178 = scmp.ne.s32.totalorder %s164, %s165
      %p179 = scmp.eq.s32.totalorder %s21, 1
      %p180 = por %p178, %p179
      %p182 = scmp.ne.s32.totalorder %s165, %s181
      %p183 = scmp.eq.s32.totalorder %s21, 0
      %p184 = por %p182, %p183
      %p185 = scmp.le.s32.totalorder 1, %s15
      %p186 = scmp.lt.s32.totalorder %s15, 3
      %p187 = pnand %p185, %p186
      %p188 = pneg %p187
      // Predicated region
      $region9: #{tpu_custom_call.1} parent=5 // pred_check
        _
      $region10: #{tpu_custom_call.1} parent=5 // pred_check_branch
        %190 = sbr.rel (%p187) target = $region12
      $region11: #{tpu_custom_call.1} parent=5 // pred_region
        %s191 = ssub.s32 %s15, 1
        // Predicated region
        $region13: #{tpu_custom_call.1} parent=11 // pred_check
          %p192 = pneg %p88
        $region14: #{tpu_custom_call.1} parent=11 // pred_check_branch
          %194 = sbr.rel (%p192) target = $region16
        $region15: #{tpu_custom_call.1} parent=11 // pred_region
          _
        $region16: #{tpu_custom_call.1} parent=11 // pred_fallthru
          _
        // Predicated region
        $region17: #{tpu_custom_call.1} parent=11 // pred_check
          %p195 = pneg %p109
        $region18: #{tpu_custom_call.1} parent=11 // pred_check_branch
          %197 = sbr.rel (%p195) target = $region20
        $region19: #{tpu_custom_call.1} parent=11 // pred_region
          _
        $region20: #{tpu_custom_call.1} parent=11 // pred_fallthru
          _
        // Predicated region
        $region21: #{tpu_custom_call.1} parent=11 // pred_check
          %p198 = pneg %p130
        $region22: #{tpu_custom_call.1} parent=11 // pred_check_branch
          %200 = sbr.rel (%p198) target = $region24
        $region23: #{tpu_custom_call.1} parent=11 // pred_region
          _
        $region24: #{tpu_custom_call.1} parent=11 // pred_fallthru
          _
        // Predicated region
        $region25: #{tpu_custom_call.1} parent=11 // pred_check
          %p201 = pneg %p151
        $region26: #{tpu_custom_call.1} parent=11 // pred_check_branch
          %203 = sbr.rel (%p201) target = $region28
        $region27: #{tpu_custom_call.1} parent=11 // pred_region
          _
        $region28: #{tpu_custom_call.1} parent=11 // pred_fallthru
          _
      $region12: #{tpu_custom_call.1} parent=5 // pred_fallthru
        _
      %p204 = scmp.lt.s32.totalorder %s15, 2
      // Predicated region
      $region29: #{tpu_custom_call.1} parent=5 // pred_check
        %p205 = pneg %p204
      $region30: #{tpu_custom_call.1} parent=5 // pred_check_branch
        %207 = sbr.rel (%p205) target = $region32
      $region31: #{tpu_custom_call.1} parent=5 // pred_region
        // Predicated region
        $region33: #{tpu_custom_call.1} parent=31 // pred_check
          %p208 = pneg %p35
        $region34: #{tpu_custom_call.1} parent=31 // pred_check_branch
          %210 = sbr.rel (%p208) target = $region36
        $region35: #{tpu_custom_call.1} parent=31 // pred_region
          %s211 = sand.u32 %s25, 1
          %s212 = sand.u32 %s25, 1
          %s213 = smul.addr %s212, 64
          %s214 = scalar_lea.vmem [#allocation2], %s213
          %s215 = smul.u32 4, %s15
          %s216 = smul.addr %s215, 8
          %s217 = scalar_lea.vmem %s0, %s216
          // Predicated region
          $region37: #{tpu_custom_call.1} parent=35 // pred_check
            _
          $region38: #{tpu_custom_call.1} parent=35 // pred_check_branch
            %219 = sbr.rel (0) target = $region40
          $region39: #{tpu_custom_call.1} parent=35 // pred_region
            // Predicated region
            $region41: #{tpu_custom_call.1} parent=39 // pred_check
              _
            $region42: #{tpu_custom_call.1} parent=39 // pred_check_branch
              %221 = sbr.rel (0) target = $region44
            $region43: #{tpu_custom_call.1} parent=39 // pred_region
              loop: start=0, step=1, limit=1
              $region45: #{tpu_custom_call.1} parent=43 // loop_pre_header
                _
              $region46: #{tpu_custom_call.1} parent=43 // loop_header
                %s223 = sphi 0, %s227
                %p224 = scmp.ge.s32.totalorder %s223, 1
                %s228 = sphi %s217, %s217
                %s229 = sphi %s214, %s214
              $region47: #{tpu_custom_call.1} parent=43 // loop_header_branch
                %226 = sbr.rel (%p224) target = $region51
              $region48: #{tpu_custom_call.1} parent=43 // loop_body
                %v230 = vld [vmem:[%s228] sm:$0xff]
                %231 = vst [vmem:[%s229] sm:$0xff] %v230
                %v232 = vld [vmem:[%s228 + $0x8] sm:$0xff]
                %233 = vst [vmem:[%s229 + $0x8] sm:$0xff] %v232
                %v234 = vld [vmem:[%s228 + $0x10] sm:$0xff]
                %235 = vst [vmem:[%s229 + $0x10] sm:$0xff] %v234
                %v236 = vld [vmem:[%s228 + $0x18] sm:$0xff]
                %237 = vst [vmem:[%s229 + $0x18] sm:$0xff] %v236
                %v238 = vld [vmem:[%s228 + $0x40] sm:$0xff]
                %239 = vst [vmem:[%s229 + $0x20] sm:$0xff] %v238
                %v240 = vld [vmem:[%s228 + $0x48] sm:$0xff]
                %241 = vst [vmem:[%s229 + $0x28] sm:$0xff] %v240
                %v242 = vld [vmem:[%s228 + $0x50] sm:$0xff]
                %243 = vst [vmem:[%s229 + $0x30] sm:$0xff] %v242
                %v244 = vld [vmem:[%s228 + $0x58] sm:$0xff]
                %245 = vst [vmem:[%s229 + $0x38] sm:$0xff] %v244
              $region49: #{tpu_custom_call.1} parent=43 // loop_footer
                %s227 = sadd.s32 1, %s223
              $region50: #{tpu_custom_call.1} parent=43 // loop_footer_branch
                %222 = sbr.rel target = $region46
              $region51: #{tpu_custom_call.1} parent=43 // loop_exit
                _
            $region44: #{tpu_custom_call.1} parent=39 // pred_fallthru
              _
            // Predicated region
            $region52: #{tpu_custom_call.1} parent=39 // pred_check
              _
            $region53: #{tpu_custom_call.1} parent=39 // pred_check_branch
              %247 = sbr.rel target = $region55
            $region54: #{tpu_custom_call.1} parent=39 // pred_region
              _
            $region55: #{tpu_custom_call.1} parent=39 // pred_fallthru
              _
          $region40: #{tpu_custom_call.1} parent=35 // pred_fallthru
            _
          %248 = vnop
        $region36: #{tpu_custom_call.1} parent=31 // pred_fallthru
          _
        // Predicated region
        $region56: #{tpu_custom_call.1} parent=31 // pred_check
          %p249 = pneg %p61
        $region57: #{tpu_custom_call.1} parent=31 // pred_check_branch
          %251 = sbr.rel (%p249) target = $region59
        $region58: #{tpu_custom_call.1} parent=31 // pred_region
          %s252 = sand.u32 %s51, 1
          %s253 = sand.u32 %s51, 1
          %s254 = smul.addr %s253, 128
          %s255 = scalar_lea.vmem [#allocation3], %s254
          %s256 = smul.u32 4, %s15
          %s257 = smul.addr %s256, 8
          %s258 = scalar_lea.vmem %s1, %s257
          // Predicated region
          $region60: #{tpu_custom_call.1} parent=58 // pred_check
            _
          $region61: #{tpu_custom_call.1} parent=58 // pred_check_branch
            %260 = sbr.rel (0) target = $region63
          $region62: #{tpu_custom_call.1} parent=58 // pred_region
            // Predicated region
            $region64: #{tpu_custom_call.1} parent=62 // pred_check
              _
            $region65: #{tpu_custom_call.1} parent=62 // pred_check_branch
              %262 = sbr.rel (0) target = $region67
            $region66: #{tpu_custom_call.1} parent=62 // pred_region
              loop: start=0, step=1, limit=1
              $region68: #{tpu_custom_call.1} parent=66 // loop_pre_header
                _
              $region69: #{tpu_custom_call.1} parent=66 // loop_header
                %s264 = sphi 0, %s268
                %p265 = scmp.ge.s32.totalorder %s264, 1
                %s269 = sphi %s258, %s258
                %s270 = sphi %s255, %s255
              $region70: #{tpu_custom_call.1} parent=66 // loop_header_branch
                %267 = sbr.rel (%p265) target = $region74
              $region71: #{tpu_custom_call.1} parent=66 // loop_body
                %v271 = vld [vmem:[%s269] sm:$0xff]
                %272 = vst [vmem:[%s270] sm:$0xff] %v271
                %v273 = vld [vmem:[%s269 + $0x8] sm:$0xff]
                %274 = vst [vmem:[%s270 + $0x8] sm:$0xff] %v273
                %v275 = vld [vmem:[%s269 + $0x10] sm:$0xff]
                %276 = vst [vmem:[%s270 + $0x10] sm:$0xff] %v275
                %v277 = vld [vmem:[%s269 + $0x18] sm:$0xff]
                %278 = vst [vmem:[%s270 + $0x18] sm:$0xff] %v277
                %v279 = vld [vmem:[%s269 + $0x40] sm:$0xff]
                %280 = vst [vmem:[%s270 + $0x20] sm:$0xff] %v279
                %v281 = vld [vmem:[%s269 + $0x48] sm:$0xff]
                %282 = vst [vmem:[%s270 + $0x28] sm:$0xff] %v281
                %v283 = vld [vmem:[%s269 + $0x50] sm:$0xff]
                %284 = vst [vmem:[%s270 + $0x30] sm:$0xff] %v283
                %v285 = vld [vmem:[%s269 + $0x58] sm:$0xff]
                %286 = vst [vmem:[%s270 + $0x38] sm:$0xff] %v285
                %v287 = vld [vmem:[%s269 + $0x80] sm:$0xff]
                %288 = vst [vmem:[%s270 + $0x40] sm:$0xff] %v287
                %v289 = vld [vmem:[%s269 + $0x88] sm:$0xff]
                %290 = vst [vmem:[%s270 + $0x48] sm:$0xff] %v289
                %v291 = vld [vmem:[%s269 + $0x90] sm:$0xff]
                %292 = vst [vmem:[%s270 + $0x50] sm:$0xff] %v291
                %v293 = vld [vmem:[%s269 + $0x98] sm:$0xff]
                %294 = vst [vmem:[%s270 + $0x58] sm:$0xff] %v293
                %v295 = vld [vmem:[%s269 + $0xc0] sm:$0xff]
                %296 = vst [vmem:[%s270 + $0x60] sm:$0xff] %v295
                %v297 = vld [vmem:[%s269 + $0xc8] sm:$0xff]
                %298 = vst [vmem:[%s270 + $0x68] sm:$0xff] %v297
                %v299 = vld [vmem:[%s269 + $0xd0] sm:$0xff]
                %300 = vst [vmem:[%s270 + $0x70] sm:$0xff] %v299
                %v301 = vld [vmem:[%s269 + $0xd8] sm:$0xff]
                %302 = vst [vmem:[%s270 + $0x78] sm:$0xff] %v301
              $region72: #{tpu_custom_call.1} parent=66 // loop_footer
                %s268 = sadd.s32 1, %s264
              $region73: #{tpu_custom_call.1} parent=66 // loop_footer_branch
                %263 = sbr.rel target = $region69
              $region74: #{tpu_custom_call.1} parent=66 // loop_exit
                _
            $region67: #{tpu_custom_call.1} parent=62 // pred_fallthru
              _
            // Predicated region
            $region75: #{tpu_custom_call.1} parent=62 // pred_check
              _
            $region76: #{tpu_custom_call.1} parent=62 // pred_check_branch
              %304 = sbr.rel target = $region78
            $region77: #{tpu_custom_call.1} parent=62 // pred_region
              _
            $region78: #{tpu_custom_call.1} parent=62 // pred_fallthru
              _
          $region63: #{tpu_custom_call.1} parent=58 // pred_fallthru
            _
          %305 = vnop
        $region59: #{tpu_custom_call.1} parent=31 // pred_fallthru
          _
      $region32: #{tpu_custom_call.1} parent=5 // pred_fallthru
        _
      %p306 = scmp.le.s32.totalorder 1, %s15
      %p307 = scmp.lt.s32.totalorder %s15, 3
      %p308 = pnand %p306, %p307
      %p309 = pneg %p308
      // Predicated region
      $region79: #{tpu_custom_call.1} parent=5 // pred_check
        _
      $region80: #{tpu_custom_call.1} parent=5 // pred_check_branch
        %311 = sbr.rel (%p308) target = $region82
      $region81: #{tpu_custom_call.1} parent=5 // pred_region
        %s312 = ssub.s32 %s15, 1
        %s313 = sand.u32 %s28, 1
        %s314 = sand.u32 %s28, 1
        %s315 = smul.addr %s314, 64
        %s316 = scalar_lea.vmem [#allocation2], %s315
        // Predicated region
        $region83: #{tpu_custom_call.1} parent=81 // pred_check
          %p317 = pneg %p41
        $region84: #{tpu_custom_call.1} parent=81 // pred_check_branch
          %319 = sbr.rel (%p317) target = $region86
        $region85: #{tpu_custom_call.1} parent=81 // pred_region
          _
        $region86: #{tpu_custom_call.1} parent=81 // pred_fallthru
          _
        %s320 = sand.u32 %s54, 1
        %s321 = sand.u32 %s54, 1
        %s322 = smul.addr %s321, 128
        %s323 = scalar_lea.vmem [#allocation3], %s322
        // Predicated region
        $region87: #{tpu_custom_call.1} parent=81 // pred_check
          %p324 = pneg %p67
        $region88: #{tpu_custom_call.1} parent=81 // pred_check_branch
          %326 = sbr.rel (%p324) target = $region90
        $region89: #{tpu_custom_call.1} parent=81 // pred_region
          _
        $region90: #{tpu_custom_call.1} parent=81 // pred_fallthru
          _
        %s327 = sand.u32 %s28, 1
        %s328 = sand.u32 %s28, 1
        %s329 = smul.addr %s328, 64
        %s330 = scalar_lea.vmem [#allocation2], %s329
        %p331 = pneg %p41
        %p332 = pneg %p38
        %s333 = sand.u32 %s54, 1
        %s334 = sand.u32 %s54, 1
        %s335 = smul.addr %s334, 128
        %s336 = scalar_lea.vmem [#allocation3], %s335
        %p337 = pneg %p67
        %p338 = pneg %p64
        %p339 = pneg %p88
        %p340 = pneg %p85
        %p341 = pneg %p109
        %p342 = pneg %p106
        %p343 = pneg %p130
        %p344 = pneg %p127
        %p345 = pneg %p151
        %p346 = pneg %p148
        %p347 = pneg %p177
        %p348 = pneg %p174
        %s349 = sand.u32 %s164, 1
        %s350 = scalar_lea.sflag [#allocation5], %s349
        %s351 = sand.u32 %s164, 1
        %s352 = smul.addr %s351, 128
        %s353 = scalar_lea.vmem [#allocation4], %s352
        %s354 = smul.u32 4, %s20
        %s355 = smul.u32 4, %s20
        %s356 = smul.u32 4, %s20
        %v357 = vld [vmem:[%s316] sm:$0xff]
        %v358 = vld [vmem:[%s316 + $0x8] sm:$0xff]
        %v359 = vld [vmem:[%s316 + $0x10] sm:$0xff]
        %v360 = vld [vmem:[%s316 + $0x18] sm:$0xff]
        %v361 = vld [vmem:[%s316 + $0x20] sm:$0xff]
        %v362 = vld [vmem:[%s316 + $0x28] sm:$0xff]
        %v363 = vld [vmem:[%s316 + $0x30] sm:$0xff]
        %v364 = vld [vmem:[%s316 + $0x38] sm:$0xff]
        %v365 = vld [vmem:[%s323] sm:$0xff]
        %v366 = vld [vmem:[%s323 + $0x8] sm:$0xff]
        %v367 = vld [vmem:[%s323 + $0x10] sm:$0xff]
        %v368 = vld [vmem:[%s323 + $0x18] sm:$0xff]
        %v369 = vld [vmem:[%s323 + $0x20] sm:$0xff]
        %v370 = vld [vmem:[%s323 + $0x28] sm:$0xff]
        %v371 = vld [vmem:[%s323 + $0x30] sm:$0xff]
        %v372 = vld [vmem:[%s323 + $0x38] sm:$0xff]
        %v373 = vld [vmem:[%s323 + $0x40] sm:$0xff]
        %v374 = vld [vmem:[%s323 + $0x48] sm:$0xff]
        %v375 = vld [vmem:[%s323 + $0x50] sm:$0xff]
        %v376 = vld [vmem:[%s323 + $0x58] sm:$0xff]
        %v377 = vld [vmem:[%s323 + $0x60] sm:$0xff]
        %v378 = vld [vmem:[%s323 + $0x68] sm:$0xff]
        %v379 = vld [vmem:[%s323 + $0x70] sm:$0xff]
        %v380 = vld [vmem:[%s323 + $0x78] sm:$0xff]
        %v381 = vld [vmem:[%s2] sm:$0xff]
        %v382 = vld [vmem:[%s2 + $0x8] sm:$0xff]
        %v383 = vld [vmem:[%s2 + $0x10] sm:$0xff]
        %v384 = vld [vmem:[%s2 + $0x18] sm:$0xff]
        %v385 = vld [vmem:[%s2 + $0x20] sm:$0xff]
        %v386 = vld [vmem:[%s2 + $0x28] sm:$0xff]
        %v387 = vld [vmem:[%s2 + $0x30] sm:$0xff]
        %v388 = vld [vmem:[%s2 + $0x38] sm:$0xff]
        %v389 = vld [vmem:[%s2 + $0x40] sm:$0xff]
        %v390 = vld [vmem:[%s2 + $0x48] sm:$0xff]
        %v391 = vld [vmem:[%s2 + $0x50] sm:$0xff]
        %v392 = vld [vmem:[%s2 + $0x58] sm:$0xff]
        %v393 = vld [vmem:[%s2 + $0x60] sm:$0xff]
        %v394 = vld [vmem:[%s2 + $0x68] sm:$0xff]
        %v395 = vld [vmem:[%s2 + $0x70] sm:$0xff]
        %v396 = vld [vmem:[%s2 + $0x78] sm:$0xff]
        %v397 = vld [vmem:[%s3] sm:$0xff]
        %v398 = vld [vmem:[%s3 + $0x8] sm:$0xff]
        %v399 = vld [vmem:[%s3 + $0x10] sm:$0xff]
        %v400 = vld [vmem:[%s3 + $0x18] sm:$0xff]
        %v401 = vld [vmem:[%s3 + $0x20] sm:$0xff]
        %v402 = vld [vmem:[%s3 + $0x28] sm:$0xff]
        %v403 = vld [vmem:[%s3 + $0x30] sm:$0xff]
        %v404 = vld [vmem:[%s3 + $0x38] sm:$0xff]
        %v405 = vld [vmem:[%s3 + $0x40] sm:$0xff]
        %v406 = vld [vmem:[%s3 + $0x48] sm:$0xff]
        %v407 = vld [vmem:[%s3 + $0x50] sm:$0xff]
        %v408 = vld [vmem:[%s3 + $0x58] sm:$0xff]
        %v409 = vld [vmem:[%s3 + $0x60] sm:$0xff]
        %v410 = vld [vmem:[%s3 + $0x68] sm:$0xff]
        %v411 = vld [vmem:[%s3 + $0x70] sm:$0xff]
        %v412 = vld [vmem:[%s3 + $0x78] sm:$0xff]
        %vm413 = vcmask 261120
        %v415 = vsel %vm413, %v397, 0
        %v418 = vsel %vm413, %v398, 0
        %v421 = vsel %vm413, %v399, 0
        %v424 = vsel %vm413, %v400, 0
        %v427 = vsel %vm413, %v401, 0
        %v430 = vsel %vm413, %v402, 0
        %v433 = vsel %vm413, %v403, 0
        %v436 = vsel %vm413, %v404, 0
        %v439 = vsel %vm413, %v405, 0
        %v442 = vsel %vm413, %v406, 0
        %v445 = vsel %vm413, %v407, 0
        %v448 = vsel %vm413, %v408, 0
        %v451 = vsel %vm413, %v409, 0
        %v454 = vsel %vm413, %v410, 0
        %v457 = vsel %vm413, %v411, 0
        %v460 = vsel %vm413, %v412, 0
        %462 = vmatprep.subr.mxu0 %v366
        %463 = vmatpush1.msra.mxu0 %v365
        %464 = vmatprep.subr.mxu0 %v370
        %465 = vmatpush1.msra.mxu0 %v369
        %466 = vmatprep.subr.mxu0 %v374
        %467 = vmatpush1.msra.mxu0 %v373
        %468 = vmatprep.subr.mxu0 %v378
        %469 = vmatpush1.msra.mxu0 %v377
        %470 = vmatprep.subr.mxu0 0.0
        %471 = vmatpush1.msra.mxu0 0.0
        %472 = vmatprep.subr.mxu0 0.0
        %473 = vmatpush1.msra.mxu0 0.0
        %474 = vmatprep.subr.mxu0 0.0
        %475 = vmatpush1.msra.mxu0 0.0
        %476 = vmatprep.subr.mxu0 0.0
        %477 = vmatpush1.msra.mxu0 0.0
        %478 = vmatprep.subr.mxu0 0.0
        %479 = vmatpush1.msra.mxu0 0.0
        %480 = vmatprep.subr.mxu0 0.0
        %481 = vmatpush1.msra.mxu0 0.0
        %482 = vmatprep.subr.mxu0 0.0
        %483 = vmatpush1.msra.mxu0 0.0
        %484 = vmatprep.subr.mxu0 0.0
        %485 = vmatpush1.msra.mxu0 0.0
        %486 = vmatprep.subr.mxu0 0.0
        %487 = vmatpush1.msra.mxu0 0.0
        %488 = vmatprep.subr.mxu0 0.0
        %489 = vmatpush1.msra.mxu0 0.0
        %490 = vmatprep.subr.mxu0 0.0
        %491 = vmatpush1.msra.mxu0 0.0
        %492 = vmatprep.subr.mxu0 0.0
        %493 = vmatpush1.msra.mxu0 0.0
        %494 = vmatprep.subr.mxu0 0.0
        %495 = vmatpush1.msra.mxu0 0.0
        %496 = vmatprep.subr.mxu0 0.0
        %497 = vmatpush1.msra.mxu0 0.0
        %498 = vmatprep.subr.mxu0 0.0
        %499 = vmatpush1.msra.mxu0 0.0
        %500 = vmatprep.subr.mxu0 0.0
        %501 = vmatpush1.msra.mxu0 0.0
        %502 = vmatprep.subr.mxu0 0.0
        %503 = vmatpush1.msra.mxu0 0.0
        %504 = vmatprep.subr.mxu0 0.0
        %505 = vmatpush1.msra.mxu0 0.0
        %506 = vmatprep.subr.mxu0 0.0
        %507 = vmatpush1.msra.mxu0 0.0
        %508 = vmatprep.subr.mxu0 0.0
        %509 = vmatpush1.msra.mxu0 0.0
        %510 = vmatprep.subr.mxu0 0.0
        %511 = vmatpush1.msra.mxu0 0.0
        %512 = vmatprep.subr.mxu0 0.0
        %513 = vmatpush1.msra.mxu0 0.0
        %514 = vmatprep.subr.mxu0 0.0
        %515 = vmatpush1.msra.mxu0 0.0
        %516 = vmatprep.subr.mxu0 0.0
        %517 = vmatpush1.msra.mxu0 0.0
        %518 = vmatprep.subr.mxu0 0.0
        %519 = vmatpush1.msra.mxu0 0.0
        %520 = vmatprep.subr.mxu0 0.0
        %521 = vmatpush1.msra.mxu0 0.0
        %522 = vmatprep.subr.mxu0 0.0
        %523 = vmatpush1.msra.mxu0 0.0
        %524 = vmatprep.subr.mxu0 0.0
        %525 = vmatpush1.msra.mxu0 0.0
        %526 = vmatprep.mubr.f32.mxu0 0.0
        %527 = vmatmul.mubr.f32.gmra.mrb[0].mxu0 %v415
        %v528 = vpop.f32.mrb[0].mxu0
        %v529 = vadd.f32 0.0, %v528
        %v530 = vpop.f32.mrb[0].mxu0
        %v531 = vadd.f32 0.0, %v530
        %532 = vmatprep.mubr.f32.mxu0 0.0
        %533 = vmatmul.mubr.f32.gmra.mrb[0].mxu0 %v418
        %v534 = vpop.f32.mrb[0].mxu0
        %v535 = vadd.f32 0.0, %v534
        %v536 = vpop.f32.mrb[0].mxu0
        %v537 = vadd.f32 0.0, %v536
        %538 = vmatprep.mubr.f32.mxu0 0.0
        %539 = vmatmul.mubr.f32.gmra.mrb[0].mxu0 %v421
        %v540 = vpop.f32.mrb[0].mxu0
        %v541 = vadd.f32 0.0, %v540
        %v542 = vpop.f32.mrb[0].mxu0
        %v543 = vadd.f32 0.0, %v542
        %544 = vmatprep.mubr.f32.mxu0 0.0
        %545 = vmatmul.mubr.f32.gmra.mrb[0].mxu0 %v424
        %v546 = vpop.f32.mrb[0].mxu0
        %v547 = vadd.f32 0.0, %v546
        %v548 = vpop.f32.mrb[0].mxu0
        %v549 = vadd.f32 0.0, %v548
        %550 = vmatprep.mubr.f32.mxu0 0.0
        %551 = vmatmul.mubr.f32.gmra.mrb[0].mxu0 %v427
        %v552 = vpop.f32.mrb[0].mxu0
        %v553 = vadd.f32 0.0, %v552
        %v554 = vpop.f32.mrb[0].mxu0
        %v555 = vadd.f32 0.0, %v554
        %556 = vmatprep.mubr.f32.mxu0 0.0
        %557 = vmatmul.mubr.f32.gmra.mrb[0].mxu0 %v430
        %v558 = vpop.f32.mrb[0].mxu0
        %v559 = vadd.f32 0.0, %v558
        %v560 = vpop.f32.mrb[0].mxu0
        %v561 = vadd.f32 0.0, %v560
        %562 = vmatprep.mubr.f32.mxu0 0.0
        %563 = vmatmul.mubr.f32.gmra.mrb[0].mxu0 %v433
        %v564 = vpop.f32.mrb[0].mxu0
        %v565 = vadd.f32 0.0, %v564
        %v566 = vpop.f32.mrb[0].mxu0
        %v567 = vadd.f32 0.0, %v566
        %568 = vmatprep.mubr.f32.mxu0 0.0
        %569 = vmatmul.mubr.f32.gmra.mrb[0].mxu0 %v436
        %v570 = vpop.f32.mrb[0].mxu0
        %v571 = vadd.f32 0.0, %v570
        %v572 = vpop.f32.mrb[0].mxu0
        %v573 = vadd.f32 0.0, %v572
        %574 = vmatprep.mubr.f32.mxu0 0.0
        %575 = vmatmul.mubr.f32.gmra.mrb[0].mxu0 %v439
        %v576 = vpop.f32.mrb[0].mxu0
        %v577 = vadd.f32 0.0, %v576
        %v578 = vpop.f32.mrb[0].mxu0
        %v579 = vadd.f32 0.0, %v578
        %580 = vmatprep.mubr.f32.mxu0 0.0
        %581 = vmatmul.mubr.f32.gmra.mrb[0].mxu0 %v442
        %v582 = vpop.f32.mrb[0].mxu0
        %v583 = vadd.f32 0.0, %v582
        %v584 = vpop.f32.mrb[0].mxu0
        %v585 = vadd.f32 0.0, %v584
        %586 = vmatprep.mubr.f32.mxu0 0.0
        %587 = vmatmul.mubr.f32.gmra.mrb[0].mxu0 %v445
        %v588 = vpop.f32.mrb[0].mxu0
        %v589 = vadd.f32 0.0, %v588
        %v590 = vpop.f32.mrb[0].mxu0
        %v591 = vadd.f32 0.0, %v590
        %592 = vmatprep.mubr.f32.mxu0 0.0
        %593 = vmatmul.mubr.f32.gmra.mrb[0].mxu0 %v448
        %v594 = vpop.f32.mrb[0].mxu0
        %v595 = vadd.f32 0.0, %v594
        %v596 = vpop.f32.mrb[0].mxu0
        %v597 = vadd.f32 0.0, %v596
        %598 = vmatprep.mubr.f32.mxu0 0.0
        %599 = vmatmul.mubr.f32.gmra.mrb[0].mxu0 %v451
        %v600 = vpop.f32.mrb[0].mxu0
        %v601 = vadd.f32 0.0, %v600
        %v602 = vpop.f32.mrb[0].mxu0
        %v603 = vadd.f32 0.0, %v602
        %604 = vmatprep.mubr.f32.mxu0 0.0
        %605 = vmatmul.mubr.f32.gmra.mrb[0].mxu0 %v454
        %v606 = vpop.f32.mrb[0].mxu0
        %v607 = vadd.f32 0.0, %v606
        %v608 = vpop.f32.mrb[0].mxu0
        %v609 = vadd.f32 0.0, %v608
        %610 = vmatprep.mubr.f32.mxu0 0.0
        %611 = vmatmul.mubr.f32.gmra.mrb[0].mxu0 %v457
        %v612 = vpop.f32.mrb[0].mxu0
        %v613 = vadd.f32 0.0, %v612
        %v614 = vpop.f32.mrb[0].mxu0
        %v615 = vadd.f32 0.0, %v614
        %616 = vmatprep.mubr.f32.mxu0 0.0
        %617 = vmatmul.mubr.f32.gmra.mrb[0].mxu0 %v460
        %v618 = vpop.f32.mrb[0].mxu0
        %v619 = vadd.f32 0.0, %v618
        %v620 = vpop.f32.mrb[0].mxu0
        %v621 = vadd.f32 0.0, %v620
        %622 = vdwg.mxu0
        %623 = vmatprep.subr.mxu0 %v368
        %624 = vmatpush1.msra.mxu0 %v367
        %625 = vmatprep.subr.mxu0 %v372
        %626 = vmatpush1.msra.mxu0 %v371
        %627 = vmatprep.subr.mxu0 %v376
        %628 = vmatpush1.msra.mxu0 %v375
        %629 = vmatprep.subr.mxu0 %v380
        %630 = vmatpush1.msra.mxu0 %v379
        %631 = vmatprep.subr.mxu0 0.0
        %632 = vmatpush1.msra.mxu0 0.0
        %633 = vmatprep.subr.mxu0 0.0
        %634 = vmatpush1.msra.mxu0 0.0
        %635 = vmatprep.subr.mxu0 0.0
        %636 = vmatpush1.msra.mxu0 0.0
        %637 = vmatprep.subr.mxu0 0.0
        %638 = vmatpush1.msra.mxu0 0.0
        %639 = vmatprep.subr.mxu0 0.0
        %640 = vmatpush1.msra.mxu0 0.0
        %641 = vmatprep.subr.mxu0 0.0
        %642 = vmatpush1.msra.mxu0 0.0
        %643 = vmatprep.subr.mxu0 0.0
        %644 = vmatpush1.msra.mxu0 0.0
        %645 = vmatprep.subr.mxu0 0.0
        %646 = vmatpush1.msra.mxu0 0.0
        %647 = vmatprep.subr.mxu0 0.0
        %648 = vmatpush1.msra.mxu0 0.0
        %649 = vmatprep.subr.mxu0 0.0
        %650 = vmatpush1.msra.mxu0 0.0
        %651 = vmatprep.subr.mxu0 0.0
        %652 = vmatpush1.msra.mxu0 0.0
        %653 = vmatprep.subr.mxu0 0.0
        %654 = vmatpush1.msra.mxu0 0.0
        %655 = vmatprep.subr.mxu0 0.0
        %656 = vmatpush1.msra.mxu0 0.0
        %657 = vmatprep.subr.mxu0 0.0
        %658 = vmatpush1.msra.mxu0 0.0
        %659 = vmatprep.subr.mxu0 0.0
        %660 = vmatpush1.msra.mxu0 0.0
        %661 = vmatprep.subr.mxu0 0.0
        %662 = vmatpush1.msra.mxu0 0.0
        %663 = vmatprep.subr.mxu0 0.0
        %664 = vmatpush1.msra.mxu0 0.0
        %665 = vmatprep.subr.mxu0 0.0
        %666 = vmatpush1.msra.mxu0 0.0
        %667 = vmatprep.subr.mxu0 0.0
        %668 = vmatpush1.msra.mxu0 0.0
        %669 = vmatprep.subr.mxu0 0.0
        %670 = vmatpush1.msra.mxu0 0.0
        %671 = vmatprep.subr.mxu0 0.0
        %672 = vmatpush1.msra.mxu0 0.0
        %673 = vmatprep.subr.mxu0 0.0
        %674 = vmatpush1.msra.mxu0 0.0
        %675 = vmatprep.subr.mxu0 0.0
        %676 = vmatpush1.msra.mxu0 0.0
        %677 = vmatprep.subr.mxu0 0.0
        %678 = vmatpush1.msra.mxu0 0.0
        %679 = vmatprep.subr.mxu0 0.0
        %680 = vmatpush1.msra.mxu0 0.0
        %681 = vmatprep.subr.mxu0 0.0
        %682 = vmatpush1.msra.mxu0 0.0
        %683 = vmatprep.subr.mxu0 0.0
        %684 = vmatpush1.msra.mxu0 0.0
        %685 = vmatprep.subr.mxu0 0.0
        %686 = vmatpush1.msra.mxu0 0.0
        %687 = vmatprep.mubr.f32.mxu0 0.0
        %688 = vmatmul.mubr.f32.gmra.mrb[0].mxu0 %v415
        %v689 = vpop.f32.mrb[0].mxu0
        %v690 = vadd.f32 0.0, %v689
        %v691 = vpop.f32.mrb[0].mxu0
        %v692 = vadd.f32 0.0, %v691
        %693 = vmatprep.mubr.f32.mxu0 0.0
        %694 = vmatmul.mubr.f32.gmra.mrb[0].mxu0 %v418
        %v695 = vpop.f32.mrb[0].mxu0
        %v696 = vadd.f32 0.0, %v695
        %v697 = vpop.f32.mrb[0].mxu0
        %v698 = vadd.f32 0.0, %v697
        %699 = vmatprep.mubr.f32.mxu0 0.0
        %700 = vmatmul.mubr.f32.gmra.mrb[0].mxu0 %v421
        %v701 = vpop.f32.mrb[0].mxu0
        %v702 = vadd.f32 0.0, %v701
        %v703 = vpop.f32.mrb[0].mxu0
        %v704 = vadd.f32 0.0, %v703
        %705 = vmatprep.mubr.f32.mxu0 0.0
        %706 = vmatmul.mubr.f32.gmra.mrb[0].mxu0 %v424
        %v707 = vpop.f32.mrb[0].mxu0
        %v708 = vadd.f32 0.0, %v707
        %v709 = vpop.f32.mrb[0].mxu0
        %v710 = vadd.f32 0.0, %v709
        %711 = vmatprep.mubr.f32.mxu0 0.0
        %712 = vmatmul.mubr.f32.gmra.mrb[0].mxu0 %v427
        %v713 = vpop.f32.mrb[0].mxu0
        %v714 = vadd.f32 0.0, %v713
        %v715 = vpop.f32.mrb[0].mxu0
        %v716 = vadd.f32 0.0, %v715
        %717 = vmatprep.mubr.f32.mxu0 0.0
        %718 = vmatmul.mubr.f32.gmra.mrb[0].mxu0 %v430
        %v719 = vpop.f32.mrb[0].mxu0
        %v720 = vadd.f32 0.0, %v719
        %v721 = vpop.f32.mrb[0].mxu0
        %v722 = vadd.f32 0.0, %v721
        %723 = vmatprep.mubr.f32.mxu0 0.0
        %724 = vmatmul.mubr.f32.gmra.mrb[0].mxu0 %v433
        %v725 = vpop.f32.mrb[0].mxu0
        %v726 = vadd.f32 0.0, %v725
        %v727 = vpop.f32.mrb[0].mxu0
        %v728 = vadd.f32 0.0, %v727
        %729 = vmatprep.mubr.f32.mxu0 0.0
        %730 = vmatmul.mubr.f32.gmra.mrb[0].mxu0 %v436
        %v731 = vpop.f32.mrb[0].mxu0
        %v732 = vadd.f32 0.0, %v731
        %v733 = vpop.f32.mrb[0].mxu0
        %v734 = vadd.f32 0.0, %v733
        %735 = vmatprep.mubr.f32.mxu0 0.0
        %736 = vmatmul.mubr.f32.gmra.mrb[0].mxu0 %v439
        %v737 = vpop.f32.mrb[0].mxu0
        %v738 = vadd.f32 0.0, %v737
        %v739 = vpop.f32.mrb[0].mxu0
        %v740 = vadd.f32 0.0, %v739
        %741 = vmatprep.mubr.f32.mxu0 0.0
        %742 = vmatmul.mubr.f32.gmra.mrb[0].mxu0 %v442
        %v743 = vpop.f32.mrb[0].mxu0
        %v744 = vadd.f32 0.0, %v743
        %v745 = vpop.f32.mrb[0].mxu0
        %v746 = vadd.f32 0.0, %v745
        %747 = vmatprep.mubr.f32.mxu0 0.0
        %748 = vmatmul.mubr.f32.gmra.mrb[0].mxu0 %v445
        %v749 = vpop.f32.mrb[0].mxu0
        %v750 = vadd.f32 0.0, %v749
        %v751 = vpop.f32.mrb[0].mxu0
        %v752 = vadd.f32 0.0, %v751
        %753 = vmatprep.mubr.f32.mxu0 0.0
        %754 = vmatmul.mubr.f32.gmra.mrb[0].mxu0 %v448
        %v755 = vpop.f32.mrb[0].mxu0
        %v756 = vadd.f32 0.0, %v755
        %v757 = vpop.f32.mrb[0].mxu0
        %v758 = vadd.f32 0.0, %v757
        %759 = vmatprep.mubr.f32.mxu0 0.0
        %760 = vmatmul.mubr.f32.gmra.mrb[0].mxu0 %v451
        %v761 = vpop.f32.mrb[0].mxu0
        %v762 = vadd.f32 0.0, %v761
        %v763 = vpop.f32.mrb[0].mxu0
        %v764 = vadd.f32 0.0, %v763
        %765 = vmatprep.mubr.f32.mxu0 0.0
        %766 = vmatmul.mubr.f32.gmra.mrb[0].mxu0 %v454
        %v767 = vpop.f32.mrb[0].mxu0
        %v768 = vadd.f32 0.0, %v767
        %v769 = vpop.f32.mrb[0].mxu0
        %v770 = vadd.f32 0.0, %v769
        %771 = vmatprep.mubr.f32.mxu0 0.0
        %772 = vmatmul.mubr.f32.gmra.mrb[0].mxu0 %v457
        %v773 = vpop.f32.mrb[0].mxu0
        %v774 = vadd.f32 0.0, %v773
        %v775 = vpop.f32.mrb[0].mxu0
        %v776 = vadd.f32 0.0, %v775
        %777 = vmatprep.mubr.f32.mxu0 0.0
        %778 = vmatmul.mubr.f32.gmra.mrb[0].mxu0 %v460
        %v779 = vpop.f32.mrb[0].mxu0
        %v780 = vadd.f32 0.0, %v779
        %v781 = vpop.f32.mrb[0].mxu0
        %v782 = vadd.f32 0.0, %v781
        %783 = vdwg.mxu0
        %vm784 = vcmask 130048
        %v786 = vsel %vm784, %v381, 0
        %v789 = vsel %vm784, %v382, 0
        %v792 = vsel %vm784, %v383, 0
        %v795 = vsel %vm784, %v384, 0
        %v798 = vsel %vm784, %v385, 0
        %v801 = vsel %vm784, %v386, 0
        %v804 = vsel %vm784, %v387, 0
        %v807 = vsel %vm784, %v388, 0
        %v810 = vsel %vm784, %v389, 0
        %v813 = vsel %vm784, %v390, 0
        %v816 = vsel %vm784, %v391, 0
        %v819 = vsel %vm784, %v392, 0
        %v822 = vsel %vm784, %v393, 0
        %v825 = vsel %vm784, %v394, 0
        %v828 = vsel %vm784, %v395, 0
        %v831 = vsel %vm784, %v396, 0
        %833 = vmatprep.subr.mxu0 %v358
        %834 = vmatpush1.msra.mxu0 %v357
        %835 = vmatprep.subr.mxu0 %v362
        %836 = vmatpush1.msra.mxu0 %v361
        %837 = vmatprep.subr.mxu0 0.0
        %838 = vmatpush1.msra.mxu0 0.0
        %839 = vmatprep.subr.mxu0 0.0
        %840 = vmatpush1.msra.mxu0 0.0
        %841 = vmatprep.subr.mxu0 0.0
        %842 = vmatpush1.msra.mxu0 0.0
        %843 = vmatprep.subr.mxu0 0.0
        %844 = vmatpush1.msra.mxu0 0.0
        %845 = vmatprep.subr.mxu0 0.0
        %846 = vmatpush1.msra.mxu0 0.0
        %847 = vmatprep.subr.mxu0 0.0
        %848 = vmatpush1.msra.mxu0 0.0
        %849 = vmatprep.subr.mxu0 0.0
        %850 = vmatpush1.msra.mxu0 0.0
        %851 = vmatprep.subr.mxu0 0.0
        %852 = vmatpush1.msra.mxu0 0.0
        %853 = vmatprep.subr.mxu0 0.0
        %854 = vmatpush1.msra.mxu0 0.0
        %855 = vmatprep.subr.mxu0 0.0
        %856 = vmatpush1.msra.mxu0 0.0
        %857 = vmatprep.subr.mxu0 0.0
        %858 = vmatpush1.msra.mxu0 0.0
        %859 = vmatprep.subr.mxu0 0.0
        %860 = vmatpush1.msra.mxu0 0.0
        %861 = vmatprep.subr.mxu0 0.0
        %862 = vmatpush1.msra.mxu0 0.0
        %863 = vmatprep.subr.mxu0 0.0
        %864 = vmatpush1.msra.mxu0 0.0
        %865 = vmatprep.subr.mxu0 0.0
        %866 = vmatpush1.msra.mxu0 0.0
        %867 = vmatprep.subr.mxu0 0.0
        %868 = vmatpush1.msra.mxu0 0.0
        %869 = vmatprep.subr.mxu0 0.0
        %870 = vmatpush1.msra.mxu0 0.0
        %871 = vmatprep.subr.mxu0 0.0
        %872 = vmatpush1.msra.mxu0 0.0
        %873 = vmatprep.subr.mxu0 0.0
        %874 = vmatpush1.msra.mxu0 0.0
        %875 = vmatprep.subr.mxu0 0.0
        %876 = vmatpush1.msra.mxu0 0.0
        %877 = vmatprep.subr.mxu0 0.0
        %878 = vmatpush1.msra.mxu0 0.0
        %879 = vmatprep.subr.mxu0 0.0
        %880 = vmatpush1.msra.mxu0 0.0
        %881 = vmatprep.subr.mxu0 0.0
        %882 = vmatpush1.msra.mxu0 0.0
        %883 = vmatprep.subr.mxu0 0.0
        %884 = vmatpush1.msra.mxu0 0.0
        %885 = vmatprep.subr.mxu0 0.0
        %886 = vmatpush1.msra.mxu0 0.0
        %887 = vmatprep.subr.mxu0 0.0
        %888 = vmatpush1.msra.mxu0 0.0
        %889 = vmatprep.subr.mxu0 0.0
        %890 = vmatpush1.msra.mxu0 0.0
        %891 = vmatprep.subr.mxu0 0.0
        %892 = vmatpush1.msra.mxu0 0.0
        %893 = vmatprep.subr.mxu0 0.0
        %894 = vmatpush1.msra.mxu0 0.0
        %895 = vmatprep.subr.mxu0 0.0
        %896 = vmatpush1.msra.mxu0 0.0
        %897 = vmatprep.mubr.f32.mxu0 0.0
        %898 = vmatmul.mubr.f32.gmra.mrb[0].mxu0 %v786
        %v899 = vpop.f32.mrb[0].mxu0
        %v900 = vadd.f32 %v529, %v899
        %v901 = vpop.f32.mrb[0].mxu0
        %v902 = vadd.f32 %v531, %v901
        %903 = vmatprep.mubr.f32.mxu0 0.0
        %904 = vmatmul.mubr.f32.gmra.mrb[0].mxu0 %v789
        %v905 = vpop.f32.mrb[0].mxu0
        %v906 = vadd.f32 %v535, %v905
        %v907 = vpop.f32.mrb[0].mxu0
        %v908 = vadd.f32 %v537, %v907
        %909 = vmatprep.mubr.f32.mxu0 0.0
        %910 = vmatmul.mubr.f32.gmra.mrb[0].mxu0 %v792
        %v911 = vpop.f32.mrb[0].mxu0
        %v912 = vadd.f32 %v541, %v911
        %v913 = vpop.f32.mrb[0].mxu0
        %v914 = vadd.f32 %v543, %v913
        %915 = vmatprep.mubr.f32.mxu0 0.0
        %916 = vmatmul.mubr.f32.gmra.mrb[0].mxu0 %v795
        %v917 = vpop.f32.mrb[0].mxu0
        %v918 = vadd.f32 %v547, %v917
        %v919 = vpop.f32.mrb[0].mxu0
        %v920 = vadd.f32 %v549, %v919
        %921 = vmatprep.mubr.f32.mxu0 0.0
        %922 = vmatmul.mubr.f32.gmra.mrb[0].mxu0 %v798
        %v923 = vpop.f32.mrb[0].mxu0
        %v924 = vadd.f32 %v553, %v923
        %v925 = vpop.f32.mrb[0].mxu0
        %v926 = vadd.f32 %v555, %v925
        %927 = vmatprep.mubr.f32.mxu0 0.0
        %928 = vmatmul.mubr.f32.gmra.mrb[0].mxu0 %v801
        %v929 = vpop.f32.mrb[0].mxu0
        %v930 = vadd.f32 %v559, %v929
        %v931 = vpop.f32.mrb[0].mxu0
        %v932 = vadd.f32 %v561, %v931
        %933 = vmatprep.mubr.f32.mxu0 0.0
        %934 = vmatmul.mubr.f32.gmra.mrb[0].mxu0 %v804
        %v935 = vpop.f32.mrb[0].mxu0
        %v936 = vadd.f32 %v565, %v935
        %v937 = vpop.f32.mrb[0].mxu0
        %v938 = vadd.f32 %v567, %v937
        %939 = vmatprep.mubr.f32.mxu0 0.0
        %940 = vmatmul.mubr.f32.gmra.mrb[0].mxu0 %v807
        %v941 = vpop.f32.mrb[0].mxu0
        %v942 = vadd.f32 %v571, %v941
        %v943 = vpop.f32.mrb[0].mxu0
        %v944 = vadd.f32 %v573, %v943
        %945 = vmatprep.mubr.f32.mxu0 0.0
        %946 = vmatmul.mubr.f32.gmra.mrb[0].mxu0 %v810
        %v947 = vpop.f32.mrb[0].mxu0
        %v948 = vadd.f32 %v577, %v947
        %v949 = vpop.f32.mrb[0].mxu0
        %v950 = vadd.f32 %v579, %v949
        %951 = vmatprep.mubr.f32.mxu0 0.0
        %952 = vmatmul.mubr.f32.gmra.mrb[0].mxu0 %v813
        %v953 = vpop.f32.mrb[0].mxu0
        %v954 = vadd.f32 %v583, %v953
        %v955 = vpop.f32.mrb[0].mxu0
        %v956 = vadd.f32 %v585, %v955
        %957 = vmatprep.mubr.f32.mxu0 0.0
        %958 = vmatmul.mubr.f32.gmra.mrb[0].mxu0 %v816
        %v959 = vpop.f32.mrb[0].mxu0
        %v960 = vadd.f32 %v589, %v959
        %v961 = vpop.f32.mrb[0].mxu0
        %v962 = vadd.f32 %v591, %v961
        %963 = vmatprep.mubr.f32.mxu0 0.0
        %964 = vmatmul.mubr.f32.gmra.mrb[0].mxu0 %v819
        %v965 = vpop.f32.mrb[0].mxu0
        %v966 = vadd.f32 %v595, %v965
        %v967 = vpop.f32.mrb[0].mxu0
        %v968 = vadd.f32 %v597, %v967
        %969 = vmatprep.mubr.f32.mxu0 0.0
        %970 = vmatmul.mubr.f32.gmra.mrb[0].mxu0 %v822
        %v971 = vpop.f32.mrb[0].mxu0
        %v972 = vadd.f32 %v601, %v971
        %v973 = vpop.f32.mrb[0].mxu0
        %v974 = vadd.f32 %v603, %v973
        %975 = vmatprep.mubr.f32.mxu0 0.0
        %976 = vmatmul.mubr.f32.gmra.mrb[0].mxu0 %v825
        %v977 = vpop.f32.mrb[0].mxu0
        %v978 = vadd.f32 %v607, %v977
        %v979 = vpop.f32.mrb[0].mxu0
        %v980 = vadd.f32 %v609, %v979
        %981 = vmatprep.mubr.f32.mxu0 0.0
        %982 = vmatmul.mubr.f32.gmra.mrb[0].mxu0 %v828
        %v983 = vpop.f32.mrb[0].mxu0
        %v984 = vadd.f32 %v613, %v983
        %v985 = vpop.f32.mrb[0].mxu0
        %v986 = vadd.f32 %v615, %v985
        %987 = vmatprep.mubr.f32.mxu0 0.0
        %988 = vmatmul.mubr.f32.gmra.mrb[0].mxu0 %v831
        %v989 = vpop.f32.mrb[0].mxu0
        %v990 = vadd.f32 %v619, %v989
        %v991 = vpop.f32.mrb[0].mxu0
        %v992 = vadd.f32 %v621, %v991
        %993 = vdwg.mxu0
        %994 = vmatprep.subr.mxu0 %v360
        %995 = vmatpush1.msra.mxu0 %v359
        %996 = vmatprep.subr.mxu0 %v364
        %997 = vmatpush1.msra.mxu0 %v363
        %998 = vmatprep.subr.mxu0 0.0
        %999 = vmatpush1.msra.mxu0 0.0
        %1000 = vmatprep.subr.mxu0 0.0
        %1001 = vmatpush1.msra.mxu0 0.0
        %1002 = vmatprep.subr.mxu0 0.0
        %1003 = vmatpush1.msra.mxu0 0.0
        %1004 = vmatprep.subr.mxu0 0.0
        %1005 = vmatpush1.msra.mxu0 0.0
        %1006 = vmatprep.subr.mxu0 0.0
        %1007 = vmatpush1.msra.mxu0 0.0
        %1008 = vmatprep.subr.mxu0 0.0
        %1009 = vmatpush1.msra.mxu0 0.0
        %1010 = vmatprep.subr.mxu0 0.0
        %1011 = vmatpush1.msra.mxu0 0.0
        %1012 = vmatprep.subr.mxu0 0.0
        %1013 = vmatpush1.msra.mxu0 0.0
        %1014 = vmatprep.subr.mxu0 0.0
        %1015 = vmatpush1.msra.mxu0 0.0
        %1016 = vmatprep.subr.mxu0 0.0
        %1017 = vmatpush1.msra.mxu0 0.0
        %1018 = vmatprep.subr.mxu0 0.0
        %1019 = vmatpush1.msra.mxu0 0.0
        %1020 = vmatprep.subr.mxu0 0.0
        %1021 = vmatpush1.msra.mxu0 0.0
        %1022 = vmatprep.subr.mxu0 0.0
        %1023 = vmatpush1.msra.mxu0 0.0
        %1024 = vmatprep.subr.mxu0 0.0
        %1025 = vmatpush1.msra.mxu0 0.0
        %1026 = vmatprep.subr.mxu0 0.0
        %1027 = vmatpush1.msra.mxu0 0.0
        %1028 = vmatprep.subr.mxu0 0.0
        %1029 = vmatpush1.msra.mxu0 0.0
        %1030 = vmatprep.subr.mxu0 0.0
        %1031 = vmatpush1.msra.mxu0 0.0
        %1032 = vmatprep.subr.mxu0 0.0
        %1033 = vmatpush1.msra.mxu0 0.0
        %1034 = vmatprep.subr.mxu0 0.0
        %1035 = vmatpush1.msra.mxu0 0.0
        %1036 = vmatprep.subr.mxu0 0.0
        %1037 = vmatpush1.msra.mxu0 0.0
        %1038 = vmatprep.subr.mxu0 0.0
        %1039 = vmatpush1.msra.mxu0 0.0
        %1040 = vmatprep.subr.mxu0 0.0
        %1041 = vmatpush1.msra.mxu0 0.0
        %1042 = vmatprep.subr.mxu0 0.0
        %1043 = vmatpush1.msra.mxu0 0.0
        %1044 = vmatprep.subr.mxu0 0.0
        %1045 = vmatpush1.msra.mxu0 0.0
        %1046 = vmatprep.subr.mxu0 0.0
        %1047 = vmatpush1.msra.mxu0 0.0
        %1048 = vmatprep.subr.mxu0 0.0
        %1049 = vmatpush1.msra.mxu0 0.0
        %1050 = vmatprep.subr.mxu0 0.0
        %1051 = vmatpush1.msra.mxu0 0.0
        %1052 = vmatprep.subr.mxu0 0.0
        %1053 = vmatpush1.msra.mxu0 0.0
        %1054 = vmatprep.subr.mxu0 0.0
        %1055 = vmatpush1.msra.mxu0 0.0
        %1056 = vmatprep.subr.mxu0 0.0
        %1057 = vmatpush1.msra.mxu0 0.0
        %1058 = vmatprep.mubr.f32.mxu0 0.0
        %1059 = vmatmul.mubr.f32.gmra.mrb[0].mxu0 %v786
        %v1060 = vpop.f32.mrb[0].mxu0
        %v1061 = vadd.f32 %v690, %v1060
        %v1062 = vpop.f32.mrb[0].mxu0
        %v1063 = vadd.f32 %v692, %v1062
        %1064 = vmatprep.mubr.f32.mxu0 0.0
        %1065 = vmatmul.mubr.f32.gmra.mrb[0].mxu0 %v789
        %v1066 = vpop.f32.mrb[0].mxu0
        %v1067 = vadd.f32 %v696, %v1066
        %v1068 = vpop.f32.mrb[0].mxu0
        %v1069 = vadd.f32 %v698, %v1068
        %1070 = vmatprep.mubr.f32.mxu0 0.0
        %1071 = vmatmul.mubr.f32.gmra.mrb[0].mxu0 %v792
        %v1072 = vpop.f32.mrb[0].mxu0
        %v1073 = vadd.f32 %v702, %v1072
        %v1074 = vpop.f32.mrb[0].mxu0
        %v1075 = vadd.f32 %v704, %v1074
        %1076 = vmatprep.mubr.f32.mxu0 0.0
        %1077 = vmatmul.mubr.f32.gmra.mrb[0].mxu0 %v795
        %v1078 = vpop.f32.mrb[0].mxu0
        %v1079 = vadd.f32 %v708, %v1078
        %v1080 = vpop.f32.mrb[0].mxu0
        %v1081 = vadd.f32 %v710, %v1080
        %1082 = vmatprep.mubr.f32.mxu0 0.0
        %1083 = vmatmul.mubr.f32.gmra.mrb[0].mxu0 %v798
        %v1084 = vpop.f32.mrb[0].mxu0
        %v1085 = vadd.f32 %v714, %v1084
        %v1086 = vpop.f32.mrb[0].mxu0
        %v1087 = vadd.f32 %v716, %v1086
        %1088 = vmatprep.mubr.f32.mxu0 0.0
        %1089 = vmatmul.mubr.f32.gmra.mrb[0].mxu0 %v801
        %v1090 = vpop.f32.mrb[0].mxu0
        %v1091 = vadd.f32 %v720, %v1090
        %v1092 = vpop.f32.mrb[0].mxu0
        %v1093 = vadd.f32 %v722, %v1092
        %1094 = vmatprep.mubr.f32.mxu0 0.0
        %1095 = vmatmul.mubr.f32.gmra.mrb[0].mxu0 %v804
        %v1096 = vpop.f32.mrb[0].mxu0
        %v1097 = vadd.f32 %v726, %v1096
        %v1098 = vpop.f32.mrb[0].mxu0
        %v1099 = vadd.f32 %v728, %v1098
        %1100 = vmatprep.mubr.f32.mxu0 0.0
        %1101 = vmatmul.mubr.f32.gmra.mrb[0].mxu0 %v807
        %v1102 = vpop.f32.mrb[0].mxu0
        %v1103 = vadd.f32 %v732, %v1102
        %v1104 = vpop.f32.mrb[0].mxu0
        %v1105 = vadd.f32 %v734, %v1104
        %1106 = vmatprep.mubr.f32.mxu0 0.0
        %1107 = vmatmul.mubr.f32.gmra.mrb[0].mxu0 %v810
        %v1108 = vpop.f32.mrb[0].mxu0
        %v1109 = vadd.f32 %v738, %v1108
        %v1110 = vpop.f32.mrb[0].mxu0
        %v1111 = vadd.f32 %v740, %v1110
        %1112 = vmatprep.mubr.f32.mxu0 0.0
        %1113 = vmatmul.mubr.f32.gmra.mrb[0].mxu0 %v813
        %v1114 = vpop.f32.mrb[0].mxu0
        %v1115 = vadd.f32 %v744, %v1114
        %v1116 = vpop.f32.mrb[0].mxu0
        %v1117 = vadd.f32 %v746, %v1116
        %1118 = vmatprep.mubr.f32.mxu0 0.0
        %1119 = vmatmul.mubr.f32.gmra.mrb[0].mxu0 %v816
        %v1120 = vpop.f32.mrb[0].mxu0
        %v1121 = vadd.f32 %v750, %v1120
        %v1122 = vpop.f32.mrb[0].mxu0
        %v1123 = vadd.f32 %v752, %v1122
        %1124 = vmatprep.mubr.f32.mxu0 0.0
        %1125 = vmatmul.mubr.f32.gmra.mrb[0].mxu0 %v819
        %v1126 = vpop.f32.mrb[0].mxu0
        %v1127 = vadd.f32 %v756, %v1126
        %v1128 = vpop.f32.mrb[0].mxu0
        %v1129 = vadd.f32 %v758, %v1128
        %1130 = vmatprep.mubr.f32.mxu0 0.0
        %1131 = vmatmul.mubr.f32.gmra.mrb[0].mxu0 %v822
        %v1132 = vpop.f32.mrb[0].mxu0
        %v1133 = vadd.f32 %v762, %v1132
        %v1134 = vpop.f32.mrb[0].mxu0
        %v1135 = vadd.f32 %v764, %v1134
        %1136 = vmatprep.mubr.f32.mxu0 0.0
        %1137 = vmatmul.mubr.f32.gmra.mrb[0].mxu0 %v825
        %v1138 = vpop.f32.mrb[0].mxu0
        %v1139 = vadd.f32 %v768, %v1138
        %v1140 = vpop.f32.mrb[0].mxu0
        %v1141 = vadd.f32 %v770, %v1140
        %1142 = vmatprep.mubr.f32.mxu0 0.0
        %1143 = vmatmul.mubr.f32.gmra.mrb[0].mxu0 %v828
        %v1144 = vpop.f32.mrb[0].mxu0
        %v1145 = vadd.f32 %v774, %v1144
        %v1146 = vpop.f32.mrb[0].mxu0
        %v1147 = vadd.f32 %v776, %v1146
        %1148 = vmatprep.mubr.f32.mxu0 0.0
        %1149 = vmatmul.mubr.f32.gmra.mrb[0].mxu0 %v831
        %v1150 = vpop.f32.mrb[0].mxu0
        %v1151 = vadd.f32 %v780, %v1150
        %v1152 = vpop.f32.mrb[0].mxu0
        %v1153 = vadd.f32 %v782, %v1152
        %1154 = vdwg.mxu0
        %v1155 = vld [vmem:[%s5] sm:$0xff]
        %v1156 = vld [vmem:[%s5 + $0x8] sm:$0xff]
        %v1157 = vld [vmem:[%s5 + $0x10] sm:$0xff]
        %v1158 = vld [vmem:[%s5 + $0x18] sm:$0xff]
        %v1159 = vld [vmem:[%s5 + $0x20] sm:$0xff]
        %v1160 = vld [vmem:[%s5 + $0x28] sm:$0xff]
        %v1161 = vld [vmem:[%s5 + $0x30] sm:$0xff]
        %v1162 = vld [vmem:[%s5 + $0x38] sm:$0xff]
        %v1163 = vld [vmem:[%s5 + $0x40] sm:$0xff]
        %v1164 = vld [vmem:[%s5 + $0x48] sm:$0xff]
        %v1165 = vld [vmem:[%s5 + $0x50] sm:$0xff]
        %v1166 = vld [vmem:[%s5 + $0x58] sm:$0xff]
        %v1167 = vld [vmem:[%s5 + $0x60] sm:$0xff]
        %v1168 = vld [vmem:[%s5 + $0x68] sm:$0xff]
        %v1169 = vld [vmem:[%s5 + $0x70] sm:$0xff]
        %v1170 = vld [vmem:[%s5 + $0x78] sm:$0xff]
        %1172 = vset.pattern.permute.xlu0 0
        %1173 = vperm.xlu0 %1172, %v1155
        %v1174 = vpop.permute.xlu0 %1173
        %1177 = vset.pattern.permute.xlu0 0
        %1178 = vperm.xlu0 %1177, %v1156
        %v1179 = vpop.permute.xlu0 %1178
        %1182 = vset.pattern.permute.xlu0 0
        %1183 = vperm.xlu0 %1182, %v1157
        %v1184 = vpop.permute.xlu0 %1183
        %1187 = vset.pattern.permute.xlu0 0
        %1188 = vperm.xlu0 %1187, %v1158
        %v1189 = vpop.permute.xlu0 %1188
        %1192 = vset.pattern.permute.xlu0 0
        %1193 = vperm.xlu0 %1192, %v1159
        %v1194 = vpop.permute.xlu0 %1193
        %1197 = vset.pattern.permute.xlu0 0
        %1198 = vperm.xlu0 %1197, %v1160
        %v1199 = vpop.permute.xlu0 %1198
        %1202 = vset.pattern.permute.xlu0 0
        %1203 = vperm.xlu0 %1202, %v1161
        %v1204 = vpop.permute.xlu0 %1203
        %1207 = vset.pattern.permute.xlu0 0
        %1208 = vperm.xlu0 %1207, %v1162
        %v1209 = vpop.permute.xlu0 %1208
        %1212 = vset.pattern.permute.xlu0 0
        %1213 = vperm.xlu0 %1212, %v1163
        %v1214 = vpop.permute.xlu0 %1213
        %1217 = vset.pattern.permute.xlu0 0
        %1218 = vperm.xlu0 %1217, %v1164
        %v1219 = vpop.permute.xlu0 %1218
        %1222 = vset.pattern.permute.xlu0 0
        %1223 = vperm.xlu0 %1222, %v1165
        %v1224 = vpop.permute.xlu0 %1223
        %1227 = vset.pattern.permute.xlu0 0
        %1228 = vperm.xlu0 %1227, %v1166
        %v1229 = vpop.permute.xlu0 %1228
        %1232 = vset.pattern.permute.xlu0 0
        %1233 = vperm.xlu0 %1232, %v1167
        %v1234 = vpop.permute.xlu0 %1233
        %1237 = vset.pattern.permute.xlu0 0
        %1238 = vperm.xlu0 %1237, %v1168
        %v1239 = vpop.permute.xlu0 %1238
        %1242 = vset.pattern.permute.xlu0 0
        %1243 = vperm.xlu0 %1242, %v1169
        %v1244 = vpop.permute.xlu0 %1243
        %1247 = vset.pattern.permute.xlu0 0
        %1248 = vperm.xlu0 %1247, %v1170
        %v1249 = vpop.permute.xlu0 %1248
        %v1251 = vadd.f32 %v900, %v1174
        %v1252 = vadd.f32 %v902, %v1174
        %v1253 = vadd.f32 %v1061, %v1174
        %v1254 = vadd.f32 %v1063, %v1174
        %v1255 = vadd.f32 %v906, %v1179
        %v1256 = vadd.f32 %v908, %v1179
        %v1257 = vadd.f32 %v1067, %v1179
        %v1258 = vadd.f32 %v1069, %v1179
        %v1259 = vadd.f32 %v912, %v1184
        %v1260 = vadd.f32 %v914, %v1184
        %v1261 = vadd.f32 %v1073, %v1184
        %v1262 = vadd.f32 %v1075, %v1184
        %v1263 = vadd.f32 %v918, %v1189
        %v1264 = vadd.f32 %v920, %v1189
        %v1265 = vadd.f32 %v1079, %v1189
        %v1266 = vadd.f32 %v1081, %v1189
        %v1267 = vadd.f32 %v924, %v1194
        %v1268 = vadd.f32 %v926, %v1194
        %v1269 = vadd.f32 %v1085, %v1194
        %v1270 = vadd.f32 %v1087, %v1194
        %v1271 = vadd.f32 %v930, %v1199
        %v1272 = vadd.f32 %v932, %v1199
        %v1273 = vadd.f32 %v1091, %v1199
        %v1274 = vadd.f32 %v1093, %v1199
        %v1275 = vadd.f32 %v936, %v1204
        %v1276 = vadd.f32 %v938, %v1204
        %v1277 = vadd.f32 %v1097, %v1204
        %v1278 = vadd.f32 %v1099, %v1204
        %v1279 = vadd.f32 %v942, %v1209
        %v1280 = vadd.f32 %v944, %v1209
        %v1281 = vadd.f32 %v1103, %v1209
        %v1282 = vadd.f32 %v1105, %v1209
        %v1283 = vadd.f32 %v948, %v1214
        %v1284 = vadd.f32 %v950, %v1214
        %v1285 = vadd.f32 %v1109, %v1214
        %v1286 = vadd.f32 %v1111, %v1214
        %v1287 = vadd.f32 %v954, %v1219
        %v1288 = vadd.f32 %v956, %v1219
        %v1289 = vadd.f32 %v1115, %v1219
        %v1290 = vadd.f32 %v1117, %v1219
        %v1291 = vadd.f32 %v960, %v1224
        %v1292 = vadd.f32 %v962, %v1224
        %v1293 = vadd.f32 %v1121, %v1224
        %v1294 = vadd.f32 %v1123, %v1224
        %v1295 = vadd.f32 %v966, %v1229
        %v1296 = vadd.f32 %v968, %v1229
        %v1297 = vadd.f32 %v1127, %v1229
        %v1298 = vadd.f32 %v1129, %v1229
        %v1299 = vadd.f32 %v972, %v1234
        %v1300 = vadd.f32 %v974, %v1234
        %v1301 = vadd.f32 %v1133, %v1234
        %v1302 = vadd.f32 %v1135, %v1234
        %v1303 = vadd.f32 %v978, %v1239
        %v1304 = vadd.f32 %v980, %v1239
        %v1305 = vadd.f32 %v1139, %v1239
        %v1306 = vadd.f32 %v1141, %v1239
        %v1307 = vadd.f32 %v984, %v1244
        %v1308 = vadd.f32 %v986, %v1244
        %v1309 = vadd.f32 %v1145, %v1244
        %v1310 = vadd.f32 %v1147, %v1244
        %v1311 = vadd.f32 %v990, %v1249
        %v1312 = vadd.f32 %v992, %v1249
        %v1313 = vadd.f32 %v1151, %v1249
        %v1314 = vadd.f32 %v1153, %v1249
        %v1315 = vtanh.pop %v1251
        %v1316 = vtanh.pop %v1252
        %v1317 = vtanh.pop %v1253
        %v1318 = vtanh.pop %v1254
        %v1319 = vtanh.pop %v1255
        %v1320 = vtanh.pop %v1256
        %v1321 = vtanh.pop %v1257
        %v1322 = vtanh.pop %v1258
        %v1323 = vtanh.pop %v1259
        %v1324 = vtanh.pop %v1260
        %v1325 = vtanh.pop %v1261
        %v1326 = vtanh.pop %v1262
        %v1327 = vtanh.pop %v1263
        %v1328 = vtanh.pop %v1264
        %v1329 = vtanh.pop %v1265
        %v1330 = vtanh.pop %v1266
        %v1331 = vtanh.pop %v1267
        %v1332 = vtanh.pop %v1268
        %v1333 = vtanh.pop %v1269
        %v1334 = vtanh.pop %v1270
        %v1335 = vtanh.pop %v1271
        %v1336 = vtanh.pop %v1272
        %v1337 = vtanh.pop %v1273
        %v1338 = vtanh.pop %v1274
        %v1339 = vtanh.pop %v1275
        %v1340 = vtanh.pop %v1276
        %v1341 = vtanh.pop %v1277
        %v1342 = vtanh.pop %v1278
        %v1343 = vtanh.pop %v1279
        %v1344 = vtanh.pop %v1280
        %v1345 = vtanh.pop %v1281
        %v1346 = vtanh.pop %v1282
        %v1347 = vtanh.pop %v1283
        %v1348 = vtanh.pop %v1284
        %v1349 = vtanh.pop %v1285
        %v1350 = vtanh.pop %v1286
        %v1351 = vtanh.pop %v1287
        %v1352 = vtanh.pop %v1288
        %v1353 = vtanh.pop %v1289
        %v1354 = vtanh.pop %v1290
        %v1355 = vtanh.pop %v1291
        %v1356 = vtanh.pop %v1292
        %v1357 = vtanh.pop %v1293
        %v1358 = vtanh.pop %v1294
        %v1359 = vtanh.pop %v1295
        %v1360 = vtanh.pop %v1296
        %v1361 = vtanh.pop %v1297
        %v1362 = vtanh.pop %v1298
        %v1363 = vld [vmem:[%s4] sm:$0xff]
        %v1364 = vld [vmem:[%s4 + $0x8] sm:$0xff]
        %v1365 = vld [vmem:[%s4 + $0x10] sm:$0xff]
        %v1366 = vld [vmem:[%s4 + $0x18] sm:$0xff]
        %v1367 = vmul.f32 %v365, %v1347
        %v1368 = vmul.f32 %v366, %v1348
        %v1369 = vmul.f32 %v367, %v1349
        %v1370 = vmul.f32 %v368, %v1350
        %v1371 = vmul.f32 %v369, %v1351
        %v1372 = vmul.f32 %v370, %v1352
        %v1373 = vmul.f32 %v371, %v1353
        %v1374 = vmul.f32 %v372, %v1354
        %v1375 = vmul.f32 %v373, %v1355
        %v1376 = vmul.f32 %v374, %v1356
        %v1377 = vmul.f32 %v375, %v1357
        %v1378 = vmul.f32 %v376, %v1358
        %v1379 = vmul.f32 %v377, %v1359
        %v1380 = vmul.f32 %v378, %v1360
        %v1381 = vmul.f32 %v379, %v1361
        %v1382 = vmul.f32 %v380, %v1362
        %v1384 = vsel %vm413, %v1363, 0
        %v1387 = vsel %vm413, %v1364, 0
        %v1390 = vsel %vm413, %v1365, 0
        %v1393 = vsel %vm413, %v1366, 0
        %1395 = vmatprep.subr.mxu0 %v1368
        %1396 = vmatpush1.msra.mxu0 %v1367
        %1397 = vmatprep.subr.mxu0 %v1372
        %1398 = vmatpush1.msra.mxu0 %v1371
        %1399 = vmatprep.subr.mxu0 %v1376
        %1400 = vmatpush1.msra.mxu0 %v1375
        %1401 = vmatprep.subr.mxu0 %v1380
        %1402 = vmatpush1.msra.mxu0 %v1379
        %1403 = vmatprep.subr.mxu0 0.0
        %1404 = vmatpush1.msra.mxu0 0.0
        %1405 = vmatprep.subr.mxu0 0.0
        %1406 = vmatpush1.msra.mxu0 0.0
        %1407 = vmatprep.subr.mxu0 0.0
        %1408 = vmatpush1.msra.mxu0 0.0
        %1409 = vmatprep.subr.mxu0 0.0
        %1410 = vmatpush1.msra.mxu0 0.0
        %1411 = vmatprep.subr.mxu0 0.0
        %1412 = vmatpush1.msra.mxu0 0.0
        %1413 = vmatprep.subr.mxu0 0.0
        %1414 = vmatpush1.msra.mxu0 0.0
        %1415 = vmatprep.subr.mxu0 0.0
        %1416 = vmatpush1.msra.mxu0 0.0
        %1417 = vmatprep.subr.mxu0 0.0
        %1418 = vmatpush1.msra.mxu0 0.0
        %1419 = vmatprep.subr.mxu0 0.0
        %1420 = vmatpush1.msra.mxu0 0.0
        %1421 = vmatprep.subr.mxu0 0.0
        %1422 = vmatpush1.msra.mxu0 0.0
        %1423 = vmatprep.subr.mxu0 0.0
        %1424 = vmatpush1.msra.mxu0 0.0
        %1425 = vmatprep.subr.mxu0 0.0
        %1426 = vmatpush1.msra.mxu0 0.0
        %1427 = vmatprep.subr.mxu0 0.0
        %1428 = vmatpush1.msra.mxu0 0.0
        %1429 = vmatprep.subr.mxu0 0.0
        %1430 = vmatpush1.msra.mxu0 0.0
        %1431 = vmatprep.subr.mxu0 0.0
        %1432 = vmatpush1.msra.mxu0 0.0
        %1433 = vmatprep.subr.mxu0 0.0
        %1434 = vmatpush1.msra.mxu0 0.0
        %1435 = vmatprep.subr.mxu0 0.0
        %1436 = vmatpush1.msra.mxu0 0.0
        %1437 = vmatprep.subr.mxu0 0.0
        %1438 = vmatpush1.msra.mxu0 0.0
        %1439 = vmatprep.subr.mxu0 0.0
        %1440 = vmatpush1.msra.mxu0 0.0
        %1441 = vmatprep.subr.mxu0 0.0
        %1442 = vmatpush1.msra.mxu0 0.0
        %1443 = vmatprep.subr.mxu0 0.0
        %1444 = vmatpush1.msra.mxu0 0.0
        %1445 = vmatprep.subr.mxu0 0.0
        %1446 = vmatpush1.msra.mxu0 0.0
        %1447 = vmatprep.subr.mxu0 0.0
        %1448 = vmatpush1.msra.mxu0 0.0
        %1449 = vmatprep.subr.mxu0 0.0
        %1450 = vmatpush1.msra.mxu0 0.0
        %1451 = vmatprep.subr.mxu0 0.0
        %1452 = vmatpush1.msra.mxu0 0.0
        %1453 = vmatprep.subr.mxu0 0.0
        %1454 = vmatpush1.msra.mxu0 0.0
        %1455 = vmatprep.subr.mxu0 0.0
        %1456 = vmatpush1.msra.mxu0 0.0
        %1457 = vmatprep.subr.mxu0 0.0
        %1458 = vmatpush1.msra.mxu0 0.0
        %1459 = vmatprep.mubr.f32.mxu0 0.0
        %1460 = vmatmul.mubr.f32.gmra.mrb[0].mxu0 %v1384
        %v1461 = vpop.f32.mrb[0].mxu0
        %v1462 = vadd.f32 0.0, %v1461
        %v1463 = vpop.f32.mrb[0].mxu0
        %v1464 = vadd.f32 0.0, %v1463
        %1465 = vmatprep.mubr.f32.mxu0 0.0
        %1466 = vmatmul.mubr.f32.gmra.mrb[0].mxu0 %v1387
        %v1467 = vpop.f32.mrb[0].mxu0
        %v1468 = vadd.f32 0.0, %v1467
        %v1469 = vpop.f32.mrb[0].mxu0
        %v1470 = vadd.f32 0.0, %v1469
        %1471 = vmatprep.mubr.f32.mxu0 0.0
        %1472 = vmatmul.mubr.f32.gmra.mrb[0].mxu0 %v1390
        %v1473 = vpop.f32.mrb[0].mxu0
        %v1474 = vadd.f32 0.0, %v1473
        %v1475 = vpop.f32.mrb[0].mxu0
        %v1476 = vadd.f32 0.0, %v1475
        %1477 = vmatprep.mubr.f32.mxu0 0.0
        %1478 = vmatmul.mubr.f32.gmra.mrb[0].mxu0 %v1393
        %v1479 = vpop.f32.mrb[0].mxu0
        %v1480 = vadd.f32 0.0, %v1479
        %v1481 = vpop.f32.mrb[0].mxu0
        %v1482 = vadd.f32 0.0, %v1481
        %1483 = vdwg.mxu0
        %1484 = vmatprep.subr.mxu0 %v1370
        %1485 = vmatpush1.msra.mxu0 %v1369
        %1486 = vmatprep.subr.mxu0 %v1374
        %1487 = vmatpush1.msra.mxu0 %v1373
        %1488 = vmatprep.subr.mxu0 %v1378
        %1489 = vmatpush1.msra.mxu0 %v1377
        %1490 = vmatprep.subr.mxu0 %v1382
        %1491 = vmatpush1.msra.mxu0 %v1381
        %1492 = vmatprep.subr.mxu0 0.0
        %1493 = vmatpush1.msra.mxu0 0.0
        %1494 = vmatprep.subr.mxu0 0.0
        %1495 = vmatpush1.msra.mxu0 0.0
        %1496 = vmatprep.subr.mxu0 0.0
        %1497 = vmatpush1.msra.mxu0 0.0
        %1498 = vmatprep.subr.mxu0 0.0
        %1499 = vmatpush1.msra.mxu0 0.0
        %1500 = vmatprep.subr.mxu0 0.0
        %1501 = vmatpush1.msra.mxu0 0.0
        %1502 = vmatprep.subr.mxu0 0.0
        %1503 = vmatpush1.msra.mxu0 0.0
        %1504 = vmatprep.subr.mxu0 0.0
        %1505 = vmatpush1.msra.mxu0 0.0
        %1506 = vmatprep.subr.mxu0 0.0
        %1507 = vmatpush1.msra.mxu0 0.0
        %1508 = vmatprep.subr.mxu0 0.0
        %1509 = vmatpush1.msra.mxu0 0.0
        %1510 = vmatprep.subr.mxu0 0.0
        %1511 = vmatpush1.msra.mxu0 0.0
        %1512 = vmatprep.subr.mxu0 0.0
        %1513 = vmatpush1.msra.mxu0 0.0
        %1514 = vmatprep.subr.mxu0 0.0
        %1515 = vmatpush1.msra.mxu0 0.0
        %1516 = vmatprep.subr.mxu0 0.0
        %1517 = vmatpush1.msra.mxu0 0.0
        %1518 = vmatprep.subr.mxu0 0.0
        %1519 = vmatpush1.msra.mxu0 0.0
        %1520 = vmatprep.subr.mxu0 0.0
        %1521 = vmatpush1.msra.mxu0 0.0
        %1522 = vmatprep.subr.mxu0 0.0
        %1523 = vmatpush1.msra.mxu0 0.0
        %1524 = vmatprep.subr.mxu0 0.0
        %1525 = vmatpush1.msra.mxu0 0.0
        %1526 = vmatprep.subr.mxu0 0.0
        %1527 = vmatpush1.msra.mxu0 0.0
        %1528 = vmatprep.subr.mxu0 0.0
        %1529 = vmatpush1.msra.mxu0 0.0
        %1530 = vmatprep.subr.mxu0 0.0
        %1531 = vmatpush1.msra.mxu0 0.0
        %1532 = vmatprep.subr.mxu0 0.0
        %1533 = vmatpush1.msra.mxu0 0.0
        %1534 = vmatprep.subr.mxu0 0.0
        %1535 = vmatpush1.msra.mxu0 0.0
        %1536 = vmatprep.subr.mxu0 0.0
        %1537 = vmatpush1.msra.mxu0 0.0
        %1538 = vmatprep.subr.mxu0 0.0
        %1539 = vmatpush1.msra.mxu0 0.0
        %1540 = vmatprep.subr.mxu0 0.0
        %1541 = vmatpush1.msra.mxu0 0.0
        %1542 = vmatprep.subr.mxu0 0.0
        %1543 = vmatpush1.msra.mxu0 0.0
        %1544 = vmatprep.subr.mxu0 0.0
        %1545 = vmatpush1.msra.mxu0 0.0
        %1546 = vmatprep.subr.mxu0 0.0
        %1547 = vmatpush1.msra.mxu0 0.0
        %1548 = vmatprep.mubr.f32.mxu0 0.0
        %1549 = vmatmul.mubr.f32.gmra.mrb[0].mxu0 %v1384
        %v1550 = vpop.f32.mrb[0].mxu0
        %v1551 = vadd.f32 0.0, %v1550
        %v1552 = vpop.f32.mrb[0].mxu0
        %v1553 = vadd.f32 0.0, %v1552
        %1554 = vmatprep.mubr.f32.mxu0 0.0
        %1555 = vmatmul.mubr.f32.gmra.mrb[0].mxu0 %v1387
        %v1556 = vpop.f32.mrb[0].mxu0
        %v1557 = vadd.f32 0.0, %v1556
        %v1558 = vpop.f32.mrb[0].mxu0
        %v1559 = vadd.f32 0.0, %v1558
        %1560 = vmatprep.mubr.f32.mxu0 0.0
        %1561 = vmatmul.mubr.f32.gmra.mrb[0].mxu0 %v1390
        %v1562 = vpop.f32.mrb[0].mxu0
        %v1563 = vadd.f32 0.0, %v1562
        %v1564 = vpop.f32.mrb[0].mxu0
        %v1565 = vadd.f32 0.0, %v1564
        %1566 = vmatprep.mubr.f32.mxu0 0.0
        %1567 = vmatmul.mubr.f32.gmra.mrb[0].mxu0 %v1393
        %v1568 = vpop.f32.mrb[0].mxu0
        %v1569 = vadd.f32 0.0, %v1568
        %v1570 = vpop.f32.mrb[0].mxu0
        %v1571 = vadd.f32 0.0, %v1570
        %1572 = vdwg.mxu0
        %v1573 = vadd.f32 %v1299, %v1462
        %v1574 = vadd.f32 %v1300, %v1464
        %v1575 = vadd.f32 %v1301, %v1551
        %v1576 = vadd.f32 %v1302, %v1553
        %v1577 = vadd.f32 %v1303, %v1468
        %v1578 = vadd.f32 %v1304, %v1470
        %v1579 = vadd.f32 %v1305, %v1557
        %v1580 = vadd.f32 %v1306, %v1559
        %v1581 = vadd.f32 %v1307, %v1474
        %v1582 = vadd.f32 %v1308, %v1476
        %v1583 = vadd.f32 %v1309, %v1563
        %v1584 = vadd.f32 %v1310, %v1565
        %v1585 = vadd.f32 %v1311, %v1480
        %v1586 = vadd.f32 %v1312, %v1482
        %v1587 = vadd.f32 %v1313, %v1569
        %v1588 = vadd.f32 %v1314, %v1571
        %v1589 = vtanh.pop %v1573
        %v1590 = vtanh.pop %v1574
        %v1591 = vtanh.pop %v1575
        %v1592 = vtanh.pop %v1576
        %v1593 = vtanh.pop %v1577
        %v1594 = vtanh.pop %v1578
        %v1595 = vtanh.pop %v1579
        %v1596 = vtanh.pop %v1580
        %v1597 = vtanh.pop %v1581
        %v1598 = vtanh.pop %v1582
        %v1599 = vtanh.pop %v1583
        %v1600 = vtanh.pop %v1584
        %v1601 = vtanh.pop %v1585
        %v1602 = vtanh.pop %v1586
        %v1603 = vtanh.pop %v1587
        %v1604 = vtanh.pop %v1588
        %v1605 = vsub.f32 1.0, %v1331
        %v1606 = vsub.f32 1.0, %v1332
        %v1607 = vsub.f32 1.0, %v1333
        %v1608 = vsub.f32 1.0, %v1334
        %v1609 = vsub.f32 1.0, %v1335
        %v1610 = vsub.f32 1.0, %v1336
        %v1611 = vsub.f32 1.0, %v1337
        %v1612 = vsub.f32 1.0, %v1338
        %v1613 = vsub.f32 1.0, %v1339
        %v1614 = vsub.f32 1.0, %v1340
        %v1615 = vsub.f32 1.0, %v1341
        %v1616 = vsub.f32 1.0, %v1342
        %v1617 = vsub.f32 1.0, %v1343
        %v1618 = vsub.f32 1.0, %v1344
        %v1619 = vsub.f32 1.0, %v1345
        %v1620 = vsub.f32 1.0, %v1346
        %v1621 = vmul.f32 %v1605, %v1589
        %v1622 = vmul.f32 %v1606, %v1590
        %v1623 = vmul.f32 %v1607, %v1591
        %v1624 = vmul.f32 %v1608, %v1592
        %v1625 = vmul.f32 %v1609, %v1593
        %v1626 = vmul.f32 %v1610, %v1594
        %v1627 = vmul.f32 %v1611, %v1595
        %v1628 = vmul.f32 %v1612, %v1596
        %v1629 = vmul.f32 %v1613, %v1597
        %v1630 = vmul.f32 %v1614, %v1598
        %v1631 = vmul.f32 %v1615, %v1599
        %v1632 = vmul.f32 %v1616, %v1600
        %v1633 = vmul.f32 %v1617, %v1601
        %v1634 = vmul.f32 %v1618, %v1602
        %v1635 = vmul.f32 %v1619, %v1603
        %v1636 = vmul.f32 %v1620, %v1604
        %v1637 = vmul.f32 %v1315, %v365
        %v1638 = vmul.f32 %v1316, %v366
        %v1639 = vmul.f32 %v1317, %v367
        %v1640 = vmul.f32 %v1318, %v368
        %v1641 = vmul.f32 %v1319, %v369
        %v1642 = vmul.f32 %v1320, %v370
        %v1643 = vmul.f32 %v1321, %v371
        %v1644 = vmul.f32 %v1322, %v372
        %v1645 = vmul.f32 %v1323, %v373
        %v1646 = vmul.f32 %v1324, %v374
        %v1647 = vmul.f32 %v1325, %v375
        %v1648 = vmul.f32 %v1326, %v376
        %v1649 = vmul.f32 %v1327, %v377
        %v1650 = vmul.f32 %v1328, %v378
        %v1651 = vmul.f32 %v1329, %v379
        %v1652 = vmul.f32 %v1330, %v380
        %v1653 = vadd.f32 %v1621, %v1637
        %v1654 = vadd.f32 %v1622, %v1638
        %v1655 = vadd.f32 %v1623, %v1639
        %v1656 = vadd.f32 %v1624, %v1640
        %v1657 = vadd.f32 %v1625, %v1641
        %v1658 = vadd.f32 %v1626, %v1642
        %v1659 = vadd.f32 %v1627, %v1643
        %v1660 = vadd.f32 %v1628, %v1644
        %v1661 = vadd.f32 %v1629, %v1645
        %v1662 = vadd.f32 %v1630, %v1646
        %v1663 = vadd.f32 %v1631, %v1647
        %v1664 = vadd.f32 %v1632, %v1648
        %v1665 = vadd.f32 %v1633, %v1649
        %v1666 = vadd.f32 %v1634, %v1650
        %v1667 = vadd.f32 %v1635, %v1651
        %v1668 = vadd.f32 %v1636, %v1652
        %1669 = vst [vmem:[%s353] sm:$0xff] %v1653
        %1670 = vst [vmem:[%s353 + $0x8] sm:$0xff] %v1654
        %1671 = vst [vmem:[%s353 + $0x10] sm:$0xff] %v1655
        %1672 = vst [vmem:[%s353 + $0x18] sm:$0xff] %v1656
        %1673 = vst [vmem:[%s353 + $0x20] sm:$0xff] %v1657
        %1674 = vst [vmem:[%s353 + $0x28] sm:$0xff] %v1658
        %1675 = vst [vmem:[%s353 + $0x30] sm:$0xff] %v1659
        %1676 = vst [vmem:[%s353 + $0x38] sm:$0xff] %v1660
        %1677 = vst [vmem:[%s353 + $0x40] sm:$0xff] %v1661
        %1678 = vst [vmem:[%s353 + $0x48] sm:$0xff] %v1662
        %1679 = vst [vmem:[%s353 + $0x50] sm:$0xff] %v1663
        %1680 = vst [vmem:[%s353 + $0x58] sm:$0xff] %v1664
        %1681 = vst [vmem:[%s353 + $0x60] sm:$0xff] %v1665
        %1682 = vst [vmem:[%s353 + $0x68] sm:$0xff] %v1666
        %1683 = vst [vmem:[%s353 + $0x70] sm:$0xff] %v1667
        %1684 = vst [vmem:[%s353 + $0x78] sm:$0xff] %v1668
        %s1685 = sand.u32 %s164, 1
        %s1686 = scalar_lea.sflag [#allocation5], %s1685
        %s1687 = sand.u32 %s164, 1
        %s1688 = smul.addr %s1687, 128
        %s1689 = scalar_lea.vmem [#allocation4], %s1688
        // Predicated region
        $region91: #{tpu_custom_call.1} parent=81 // pred_check
          %p1690 = pneg %p174
        $region92: #{tpu_custom_call.1} parent=81 // pred_check_branch
          %1692 = sbr.rel (%p1690) target = $region94
        $region93: #{tpu_custom_call.1} parent=81 // pred_region
          %s1693 = smul.u32 4, %s20
          %s1695 = ssub.s32 2048, 2048
          %1696 = vsyncadd %s1686, %s1695
          %s1697 = smul.addr %s1693, 128
          %s1698 = scalar_lea.hbm %s6, %s1697
          %s1699 = sshll.u32 %s1689, 4
          %s1700 = int_to_ptr.vmem [resolvable:$true] %s1699
          %1705 = dma.vmem_to_hbm [thread:$0]  %s1700, 2048, %s1698, %s1686, 512, 1024, 32
        $region94: #{tpu_custom_call.1} parent=81 // pred_fallthru
          _
      $region82: #{tpu_custom_call.1} parent=5 // pred_fallthru
        _
      %p1706 = scmp.le.s32.totalorder 2, %s15
      // Predicated region
      $region95: #{tpu_custom_call.1} parent=5 // pred_check
        %p1707 = pneg %p1706
      $region96: #{tpu_custom_call.1} parent=5 // pred_check_branch
        %1709 = sbr.rel (%p1707) target = $region98
      $region97: #{tpu_custom_call.1} parent=5 // pred_region
        %s1710 = ssub.s32 %s15, 2
        // Predicated region
        $region99: #{tpu_custom_call.1} parent=97 // pred_check
          %p1711 = pneg %p180
        $region100: #{tpu_custom_call.1} parent=97 // pred_check_branch
          %1713 = sbr.rel (%p1711) target = $region102
        $region101: #{tpu_custom_call.1} parent=97 // pred_region
          %s1714 = sand.u32 %s165, 1
          %s1715 = scalar_lea.sflag [#allocation5], %s1714
          %s1716 = sand.u32 %s165, 1
          %s1717 = smul.addr %s1716, 128
          %s1718 = scalar_lea.vmem [#allocation4], %s1717
          %1719 = dma.done %s1715, 2048
        $region102: #{tpu_custom_call.1} parent=97 // pred_fallthru
          _
      $region98: #{tpu_custom_call.1} parent=5 // pred_fallthru
        _
    $region6: #{tpu_custom_call.1} parent=1 // loop_footer
      %s19 = sadd.s32 1, %s15
    $region7: #{tpu_custom_call.1} parent=1 // loop_footer_branch
      %14 = sbr.rel target = $region3
    $region8: #{tpu_custom_call.1} parent=1 // loop_exit
      _
    %1720 = vsyncpa [#allocation5], 1
    %s1721 = scalar_lea.sflag [#allocation5], 1
    %1722 = vsyncpa %s1721, 1

</llo_original>
